<compile_context>
chip_gen: v6e
topology: v6e:2x2x1
jax: 0.10.0
libtpu: 0.0.40
codegen_flags: <defaults>
</compile_context>

<pallas_src>
import functools

import numpy as np
import jax
import jax.numpy as jnp
from jax.experimental import pallas as pl
from jax.experimental.pallas import tpu as pltpu


def _sa_maxpool_conv_kernel(*refs, h2, w2, sa_half, negative_slope, use_iota):
    if use_iota:
        planes_ref, wbig_ref, o_ref, rhs_ref = refs
        rowcol_ref = None
    else:
        planes_ref, wbig_ref, rowcol_ref, o_ref, rhs_ref = refs

    c_in = planes_ref.shape[0] // 4
    c_out = o_ref.shape[0]
    sb = o_ref.shape[1]                      # flattened (imgs, h2, w2) lane axis
    k_pad = rhs_ref.shape[0]
    kk = 2 * sa_half + 1
    n_conv = 9 * c_in
    bias_row = n_conv + 2 * kk * kk

    # ---- per-lane (row, col) inside its image, for the zero-padding masks ----
    if use_iota:
        lane = jax.lax.broadcasted_iota(jnp.int32, (1, sb), 1)
        col = lane & (w2 - 1)                          # w2, h2 are powers of two
        row = (lane >> (w2.bit_length() - 1)) & (h2 - 1)
    else:
        rc = rowcol_ref[...]
        row, col = rc[0:1, :], rc[1:2, :]

    # Factored validity masks: one compare per axis offset, one AND per (di, dj),
    # computed once and cached (old kernel re-derived 4 cmp + 3 and ~60 times).
    def axis_masks(idx, extent):
        masks = {}
        for d in range(-sa_half, sa_half + 1):
            if d < 0:
                masks[d] = idx >= -d
            elif d > 0:
                masks[d] = idx < (extent - d)
        return masks

    row_ok = axis_masks(row, h2)
    col_ok = axis_masks(col, w2)
    cache = {}

    def valid(di, dj):
        if di == 0 and dj == 0:
            return None
        if (di, dj) not in cache:
            if di == 0:
                cache[(di, dj)] = col_ok[dj]
            elif dj == 0:
                cache[(di, dj)] = row_ok[di]
            else:
                cache[(di, dj)] = row_ok[di] & col_ok[dj]
        return cache[(di, dj)]

    def shifted(arr, di, dj):
        """`arr` sampled at (row+di, col+dj) of the same image; 0 outside (zero pad).

        Lane rolls wrap across image boundaries, but every wrapped position is
        exactly a masked (out-of-image) position, so the mask restores zero-padding.
        """
        k = di * w2 + dj
        t = arr if k == 0 else pltpu.roll(arr, (sb - k) % sb, 1)   # XLU lane roll
        m = valid(di, dj)
        return t if m is None else jnp.where(m, t, 0.0)

    # ---- pool1: MaxPool2d(2,2); the 4 window planes were pre-split in the wrapper ----
    p = planes_ref[...].astype(jnp.float32)                        # (4*c_in, sb)
    x1 = jnp.maximum(jnp.maximum(p[0:c_in], p[c_in:2 * c_in]),
                     jnp.maximum(p[2 * c_in:3 * c_in], p[3 * c_in:4 * c_in]))

    # ---- pool2: ZeroPad2d((0,1,0,1)) + MaxPool2d(2,1) via lane rolls + masks ----
    x1p = jnp.maximum(jnp.maximum(x1, shifted(x1, 0, 1)),
                      jnp.maximum(shifted(x1, 1, 0), shifted(x1, 1, 1)))

    # ---- build the single fused matmul RHS in VMEM ----
    # rows [0, 9*c_in): 3x3 conv taps (tap-major, c_in rows per tap)
    for di in (-1, 0, 1):
        for dj in (-1, 0, 1):
            t = (di + 1) * 3 + (dj + 1)
            rhs_ref[t * c_in:(t + 1) * c_in, :] = shifted(x1p, di, dj)

    # rows [9*c_in, 9*c_in + 2*kk*kk): SA taps, (avg, max) pair per kk*kk position
    avg = jnp.mean(x1p, axis=0, keepdims=True)                     # (1, sb)
    mx = jnp.max(x1p, axis=0, keepdims=True)                       # (1, sb)
    sa_in = jnp.concatenate([avg, mx], axis=0)                     # (2, sb)
    for di in range(-sa_half, sa_half + 1):
        for dj in range(-sa_half, sa_half + 1):
            t = (di + sa_half) * kk + (dj + sa_half)
            base = n_conv + 2 * t
            rhs_ref[base:base + 2, :] = shifted(sa_in, di, dj)

    # bias row (carries the folded BN shift through the matmul) + zeroed K padding
    rhs_ref[bias_row:bias_row + 1, :] = jnp.ones((1, sb), jnp.float32)
    if k_pad > bias_row + 1:
        rhs_ref[bias_row + 1:k_pad, :] = jnp.zeros(
            (k_pad - bias_row - 1, sb), jnp.float32)

    # ---- one MXU matmul: [3x3 conv + BN shift | 7x7 SA conv] ----
    acc = jnp.dot(wbig_ref[...], rhs_ref[...],
                  preferred_element_type=jnp.float32)              # (c_out+1, sb)

    x2 = acc[0:c_out]
    x2 = jnp.where(x2 > 0, x2, negative_slope * x2)                # LeakyReLU(0.1)
    # sigmoid: exp on the EUP, exact reciprocal (keeps 1e-4 agreement with the ref)
    sa = pl.reciprocal(1.0 + jnp.exp(-acc[c_out:c_out + 1]))       # (1, sb)
    o_ref[...] = (x2 * sa).astype(o_ref.dtype)                     # one lane-dense store


def spatial_attention2_maxpool_conv(x, w3, w7, bn_gamma, bn_beta, bn_mean, bn_var,
                                    *, eps=1e-4, negative_slope=0.1,
                                    sa_kernel_size=7):
    n, c_in, h, w = x.shape
    c_out = w3.shape[0]
    assert h % 2 == 0 and w % 2 == 0, "MaxPool2d(2,2) path assumes even H, W"
    assert sa_kernel_size in (3, 7)
    h2, w2 = h // 2, w // 2
    hw = h2 * w2
    kk = sa_kernel_size
    sa_half = kk // 2
    assert w3.shape == (c_out, c_in, 3, 3)
    assert w7.shape == (1, 2, kk, kk)

    # ---- fold eval-mode BatchNorm into the conv weights + a per-channel shift ----
    scale = (bn_gamma / jnp.sqrt(bn_var + eps)).astype(jnp.float32)
    shift = bn_beta.astype(jnp.float32) - bn_mean.astype(jnp.float32) * scale
    w3f = w3.astype(jnp.float32) * scale[:, None, None, None]

    # ---- one fused weight matrix: [3x3 conv | 7x7 SA conv | BN-shift bias col] ----
    n_conv = 9 * c_in
    n_sa = 2 * kk * kk
    k_logical = n_conv + n_sa + 1                  # +1: bias row (BN shift)
    k_pad = ((k_logical + 7) // 8) * 8             # sublane-aligned K, zero padded
    wconv = w3f.transpose(0, 2, 3, 1).reshape(c_out, n_conv)       # col = tap*c_in+ci
    w7row = w7.astype(jnp.float32).transpose(0, 2, 3, 1).reshape(n_sa)  # (tap,[avg,max])
    wbig = jnp.zeros((c_out + 1, k_pad), jnp.float32)
    wbig = wbig.at[:c_out, :n_conv].set(wconv)
    wbig = wbig.at[c_out, n_conv:n_conv + n_sa].set(w7row)
    wbig = wbig.at[:c_out, n_conv + n_sa].set(shift)
    # NOTE: on v6e/v7x the MXU operands could be cast to bf16 (f32 accumulation) for
    # 2x MXU throughput / half the DMA; kept f32 here to match the f32 reference.

    # ---- images per grid step: lane-dense (multiple of 128 lanes) + VMEM budget ----
    in_dsize = jnp.dtype(x.dtype).itemsize

    def vmem_bytes(imgs):
        s = imgs * hw
        return (2 * 4 * c_in * s * in_dsize        # double-buffered planes block
                + 2 * c_out * s * 4                # double-buffered output block
                + k_pad * s * 4                    # fused-matmul RHS scratch
                + 2 * (c_out + 1) * k_pad * 4)     # weight block

    budget = 24 * 1024 * 1024                      # safe on v5e/v6e and v7x (64 MiB)
    divisors = [d for d in range(1, n + 1) if n % d == 0]
    fitting = [d for d in divisors if vmem_bytes(d) <= budget] or divisors[:1]
    dense = [d for d in fitting if (d * hw) % 128 == 0]
    # Smallest lane-dense tile -> maximal #parallel grid steps (feeds v7x's second
    # TensorCore, keeps the DMA pipeline busy); else the largest fitting tile.
    bn_imgs = dense[0] if dense else fitting[-1]
    sb = bn_imgs * hw
    grid = (n // bn_imgs,)
    # TODO(synk): for single images larger than the VMEM budget, tile the spatial
    # axis with a 3-row halo instead of whole images per grid step.

    # ---- wrapper-side layout plumbing (pure relayout, stays in the input dtype;
    #      pass bf16 x on v6e/v7x to halve this pass + the kernel's input DMA) ----
    # TODO(synk): fold the 2x2 window split into the kernel with strided loads to
    # remove this extra HBM pass at production sizes.
    planes = (x.reshape(n, c_in, h2, 2, w2, 2)
              .transpose(3, 5, 1, 0, 2, 4)
              .reshape(4 * c_in, n * hw))

    use_iota = (w2 & (w2 - 1) == 0) and (h2 & (h2 - 1) == 0)
    inputs = [planes, wbig]
    in_specs = [
        pl.BlockSpec((4 * c_in, sb), lambda g: (0, g)),            # pooled planes
        pl.BlockSpec((c_out + 1, k_pad), lambda g: (0, 0)),        # fused weights
    ]
    if not use_iota:
        # General fallback: ship per-lane (row, col) indices instead of computing
        # them with shifts/ands in-kernel (avoids vector integer div/mod).
        ii = jnp.arange(hw, dtype=jnp.int32) // w2
        jj = jnp.arange(hw, dtype=jnp.int32) % w2
        rowcol = jnp.stack([jnp.tile(ii, bn_imgs), jnp.tile(jj, bn_imgs)], axis=0)
        inputs.append(rowcol)
        in_specs.append(pl.BlockSpec((2, sb), lambda g: (0, 0)))

    kernel = functools.partial(_sa_maxpool_conv_kernel, h2=h2, w2=w2,
                               sa_half=sa_half, negative_slope=negative_slope,
                               use_iota=use_iota)

    grid_spec = pltpu.PrefetchScalarGridSpec(
        num_scalar_prefetch=0,
        grid=grid,
        in_specs=in_specs,
        out_specs=pl.BlockSpec((c_out, sb), lambda g: (0, g)),
        scratch_shapes=[pltpu.VMEM((k_pad, sb), jnp.float32)],     # fused-matmul RHS
    )

    flops = int(grid[0] * (2 * (c_out + 1) * k_pad * sb + 24 * c_in * sb))
    cost = pl.CostEstimate(flops=flops, transcendentals=int(n * hw),
                           bytes_accessed=int(in_dsize * 4 * c_in * n * hw
                                              + 4 * c_out * n * hw))

    out_flat = pl.pallas_call(
        kernel,
        out_shape=jax.ShapeDtypeStruct((c_out, n * hw), jnp.float32),
        grid_spec=grid_spec,
        compiler_params=pltpu.CompilerParams(
            dimension_semantics=("parallel",),
            vmem_limit_bytes=32 * 1024 * 1024),
        cost_estimate=cost,
    )(*inputs)

    # (c_out, n*h2*w2) -> (n, c_out, h2, w2)
    return out_flat.reshape(c_out, n, h2, w2).transpose(1, 0, 2, 3)


def _reference(x, w3, w7, gamma, beta, mean, var, eps=1e-4, slope=0.1):
    """Pure-JAX reference mirroring the PyTorch forward (BN in eval mode)."""
    x1 = jax.lax.reduce_window(x, -jnp.inf, jax.lax.max,
                               (1, 1, 2, 2), (1, 1, 2, 2), 'VALID')
    x1 = jnp.pad(x1, ((0, 0), (0, 0), (0, 1), (0, 1)))
    x1 = jax.lax.reduce_window(x1, -jnp.inf, jax.lax.max,
                               (1, 1, 2, 2), (1, 1, 1, 1), 'VALID')
    conv = jax.lax.conv_general_dilated(
        x1, w3, (1, 1), ((1, 1), (1, 1)),
        dimension_numbers=('NCHW', 'OIHW', 'NCHW'))
    bn = ((conv - mean[None, :, None, None])
          / jnp.sqrt(var[None, :, None, None] + eps)
          * gamma[None, :, None, None] + beta[None, :, None, None])
    x2 = jnp.where(bn > 0, bn, slope * bn)
    avgout = jnp.mean(x1, axis=1, keepdims=True)
    maxout = jnp.max(x1, axis=1, keepdims=True)
    sa_in = jnp.concatenate([avgout, maxout], axis=1)
    sa = jax.lax.conv_general_dilated(
        sa_in, w7, (1, 1), ((3, 3), (3, 3)),
        dimension_numbers=('NCHW', 'OIHW', 'NCHW'))
    return x2 * jax.nn.sigmoid(sa)


if __name__ == "__main__":
    N, C_IN, C_OUT, H, W = 2, 4, 8, 16, 16

    key = jax.random.PRNGKey(0)
    kx, k3, k7 = jax.random.split(key, 3)
    x = jax.random.normal(kx, (N, C_IN, H, W), jnp.float32)
    # Deterministic synthetic parameters (shapes per the module's __init__).
    w3 = 0.1 * jax.random.normal(k3, (C_OUT, C_IN, 3, 3), jnp.float32)
    w7 = 0.1 * jax.random.normal(k7, (1, 2, 7, 7), jnp.float32)
    bn_gamma = 1.0 + 0.1 * jnp.arange(C_OUT, dtype=jnp.float32)
    bn_beta = 0.05 * jnp.arange(C_OUT, dtype=jnp.float32)
    bn_mean = 0.01 * jnp.arange(C_OUT, dtype=jnp.float32)
    bn_var = 1.0 + 0.02 * jnp.arange(C_OUT, dtype=jnp.float32)

    out = spatial_attention2_maxpool_conv(
        x, w3, w7, bn_gamma, bn_beta, bn_mean, bn_var,
        eps=1e-4, negative_slope=0.1, sa_kernel_size=7)
    out = jax.block_until_ready(out)

    ref = _reference(x, w3, w7, bn_gamma, bn_beta, bn_mean, bn_var)
    np.testing.assert_allclose(np.asarray(out), np.asarray(ref),
                               rtol=1e-4, atol=1e-4)
    print("KERNEL_OK")
</pallas_src>

<mosaic_0001>
module attributes {stable_mosaic.version = 11 : i64} {
  func.func @_sa_maxpool_conv_kernel(%arg0: i32, %arg1: memref<16x128xf32, #tpu.memory_space<vmem>>, %arg2: memref<9x136xf32, #tpu.memory_space<vmem>>, %arg3: memref<8x128xf32, #tpu.memory_space<vmem>>, %arg4: memref<136x128xf32, #tpu.memory_space<vmem>>) attributes {dimension_semantics = [#tpu.dimension_semantics<parallel>], iteration_bounds = array<i64: 1>, scalar_prefetch = 0 : i64, scratch_operands = 1 : i64, tpu.core_type = #tpu.core_type<tc>, window_params = [{transform_indices = @transform_0, window_bounds = array<i64: 16, 128>}, {pipeline_mode = #tpu.pipeline_mode<synchronous>, transform_indices = @transform_1, window_bounds = array<i64: 9, 136>}, {transform_indices = @transform_2, window_bounds = array<i64: 8, 128>}]} {
    %0 = tpu.iota {dimensions = array<i32: 1>} : vector<1x128xi32>
    %c7_i32 = arith.constant 7 : i32
    %1 = vector.broadcast %c7_i32 : i32 to vector<1x128xi32>
    %2 = arith.andi %0, %1 : vector<1x128xi32>
    %c3_i32 = arith.constant 3 : i32
    %3 = vector.broadcast %c3_i32 : i32 to vector<1x128xi32>
    %4 = arith.shrsi %0, %3 : vector<1x128xi32>
    %c7_i32_0 = arith.constant 7 : i32
    %5 = vector.broadcast %c7_i32_0 : i32 to vector<1x128xi32>
    %6 = arith.andi %4, %5 : vector<1x128xi32>
    %c3_i32_1 = arith.constant 3 : i32
    %7 = vector.broadcast %c3_i32_1 : i32 to vector<1x128xi32>
    %8 = arith.cmpi sge, %6, %7 : vector<1x128xi32>
    %c2_i32 = arith.constant 2 : i32
    %9 = vector.broadcast %c2_i32 : i32 to vector<1x128xi32>
    %10 = arith.cmpi sge, %6, %9 : vector<1x128xi32>
    %c1_i32 = arith.constant 1 : i32
    %11 = vector.broadcast %c1_i32 : i32 to vector<1x128xi32>
    %12 = arith.cmpi sge, %6, %11 : vector<1x128xi32>
    %c7_i32_2 = arith.constant 7 : i32
    %13 = vector.broadcast %c7_i32_2 : i32 to vector<1x128xi32>
    %14 = arith.cmpi slt, %6, %13 : vector<1x128xi32>
    %c6_i32 = arith.constant 6 : i32
    %15 = vector.broadcast %c6_i32 : i32 to vector<1x128xi32>
    %16 = arith.cmpi slt, %6, %15 : vector<1x128xi32>
    %c5_i32 = arith.constant 5 : i32
    %17 = vector.broadcast %c5_i32 : i32 to vector<1x128xi32>
    %18 = arith.cmpi slt, %6, %17 : vector<1x128xi32>
    %c3_i32_3 = arith.constant 3 : i32
    %19 = vector.broadcast %c3_i32_3 : i32 to vector<1x128xi32>
    %20 = arith.cmpi sge, %2, %19 : vector<1x128xi32>
    %c2_i32_4 = arith.constant 2 : i32
    %21 = vector.broadcast %c2_i32_4 : i32 to vector<1x128xi32>
    %22 = arith.cmpi sge, %2, %21 : vector<1x128xi32>
    %c1_i32_5 = arith.constant 1 : i32
    %23 = vector.broadcast %c1_i32_5 : i32 to vector<1x128xi32>
    %24 = arith.cmpi sge, %2, %23 : vector<1x128xi32>
    %c7_i32_6 = arith.constant 7 : i32
    %25 = vector.broadcast %c7_i32_6 : i32 to vector<1x128xi32>
    %26 = arith.cmpi slt, %2, %25 : vector<1x128xi32>
    %c6_i32_7 = arith.constant 6 : i32
    %27 = vector.broadcast %c6_i32_7 : i32 to vector<1x128xi32>
    %28 = arith.cmpi slt, %2, %27 : vector<1x128xi32>
    %c5_i32_8 = arith.constant 5 : i32
    %29 = vector.broadcast %c5_i32_8 : i32 to vector<1x128xi32>
    %30 = arith.cmpi slt, %2, %29 : vector<1x128xi32>
    %c0 = arith.constant 0 : index
    %c0_9 = arith.constant 0 : index
    %31 = vector.load %arg1[%c0, %c0_9] : memref<16x128xf32, #tpu.memory_space<vmem>>, vector<16x128xf32>
    %32 = vector.extract_strided_slice %31 {offsets = [0, 0], sizes = [4, 128], strides = [1, 1]} : vector<16x128xf32> to vector<4x128xf32>
    %33 = vector.extract_strided_slice %31 {offsets = [4, 0], sizes = [4, 128], strides = [1, 1]} : vector<16x128xf32> to vector<4x128xf32>
    %34 = arith.maximumf %32, %33 : vector<4x128xf32>
    %35 = vector.extract_strided_slice %31 {offsets = [8, 0], sizes = [4, 128], strides = [1, 1]} : vector<16x128xf32> to vector<4x128xf32>
    %36 = vector.extract_strided_slice %31 {offsets = [12, 0], sizes = [4, 128], strides = [1, 1]} : vector<16x128xf32> to vector<4x128xf32>
    %37 = arith.maximumf %35, %36 : vector<4x128xf32>
    %38 = arith.maximumf %34, %37 : vector<4x128xf32>
    %c127_i32 = arith.constant 127 : i32
    %39 = tpu.dynamic_rotate %38 by %c127_i32 dim 1 : vector<4x128xf32>, i32 -> vector<4x128xf32>
    %cst = arith.constant 0.000000e+00 : f32
    %40 = vector.shape_cast %26 : vector<1x128xi1> to vector<1x128xi1>
    %41 = vector.broadcast %40 : vector<1x128xi1> to vector<4x128xi1>
    %42 = vector.broadcast %cst : f32 to vector<4x128xf32>
    %43 = arith.select %41, %39, %42 : vector<4x128xi1>, vector<4x128xf32>
    %44 = arith.maximumf %38, %43 : vector<4x128xf32>
    %c120_i32 = arith.constant 120 : i32
    %45 = tpu.dynamic_rotate %38 by %c120_i32 dim 1 : vector<4x128xf32>, i32 -> vector<4x128xf32>
    %cst_10 = arith.constant 0.000000e+00 : f32
    %46 = vector.shape_cast %14 : vector<1x128xi1> to vector<1x128xi1>
    %47 = vector.broadcast %46 : vector<1x128xi1> to vector<4x128xi1>
    %48 = vector.broadcast %cst_10 : f32 to vector<4x128xf32>
    %49 = arith.select %47, %45, %48 : vector<4x128xi1>, vector<4x128xf32>
    %c119_i32 = arith.constant 119 : i32
    %50 = tpu.dynamic_rotate %38 by %c119_i32 dim 1 : vector<4x128xf32>, i32 -> vector<4x128xf32>
    %51 = arith.andi %14, %26 : vector<1x128xi1>
    %cst_11 = arith.constant 0.000000e+00 : f32
    %52 = vector.shape_cast %51 : vector<1x128xi1> to vector<1x128xi1>
    %53 = vector.broadcast %52 : vector<1x128xi1> to vector<4x128xi1>
    %54 = vector.broadcast %cst_11 : f32 to vector<4x128xf32>
    %55 = arith.select %53, %50, %54 : vector<4x128xi1>, vector<4x128xf32>
    %56 = arith.maximumf %49, %55 : vector<4x128xf32>
    %57 = arith.maximumf %44, %56 : vector<4x128xf32>
    %c9_i32 = arith.constant 9 : i32
    %58 = tpu.dynamic_rotate %57 by %c9_i32 dim 1 : vector<4x128xf32>, i32 -> vector<4x128xf32>
    %59 = arith.andi %12, %24 : vector<1x128xi1>
    %cst_12 = arith.constant 0.000000e+00 : f32
    %60 = vector.shape_cast %59 : vector<1x128xi1> to vector<1x128xi1>
    %61 = vector.broadcast %60 : vector<1x128xi1> to vector<4x128xi1>
    %62 = vector.broadcast %cst_12 : f32 to vector<4x128xf32>
    %63 = arith.select %61, %58, %62 : vector<4x128xi1>, vector<4x128xf32>
    %c0_13 = arith.constant 0 : index
    %c0_14 = arith.constant 0 : index
    %64 = vector.load %arg4[%c0_13, %c0_14] : memref<136x128xf32, #tpu.memory_space<vmem>>, vector<4x128xf32>
    tpu.vector_store %arg4[%c0_13, %c0_14], %63 {strides = array<i32>} : memref<136x128xf32, #tpu.memory_space<vmem>>, vector<4x128xf32>,
    %c8_i32 = arith.constant 8 : i32
    %65 = tpu.dynamic_rotate %57 by %c8_i32 dim 1 : vector<4x128xf32>, i32 -> vector<4x128xf32>
    %cst_15 = arith.constant 0.000000e+00 : f32
    %66 = vector.shape_cast %12 : vector<1x128xi1> to vector<1x128xi1>
    %67 = vector.broadcast %66 : vector<1x128xi1> to vector<4x128xi1>
    %68 = vector.broadcast %cst_15 : f32 to vector<4x128xf32>
    %69 = arith.select %67, %65, %68 : vector<4x128xi1>, vector<4x128xf32>
    %c4 = arith.constant 4 : index
    %c0_16 = arith.constant 0 : index
    %70 = vector.load %arg4[%c4, %c0_16] : memref<136x128xf32, #tpu.memory_space<vmem>>, vector<4x128xf32>
    tpu.vector_store %arg4[%c4, %c0_16], %69 {strides = array<i32>} : memref<136x128xf32, #tpu.memory_space<vmem>>, vector<4x128xf32>,
    %c7_i32_17 = arith.constant 7 : i32
    %71 = tpu.dynamic_rotate %57 by %c7_i32_17 dim 1 : vector<4x128xf32>, i32 -> vector<4x128xf32>
    %72 = arith.andi %12, %26 : vector<1x128xi1>
    %cst_18 = arith.constant 0.000000e+00 : f32
    %73 = vector.shape_cast %72 : vector<1x128xi1> to vector<1x128xi1>
    %74 = vector.broadcast %73 : vector<1x128xi1> to vector<4x128xi1>
    %75 = vector.broadcast %cst_18 : f32 to vector<4x128xf32>
    %76 = arith.select %74, %71, %75 : vector<4x128xi1>, vector<4x128xf32>
    %c8 = arith.constant 8 : index
    %c0_19 = arith.constant 0 : index
    %77 = vector.load %arg4[%c8, %c0_19] : memref<136x128xf32, #tpu.memory_space<vmem>>, vector<4x128xf32>
    tpu.vector_store %arg4[%c8, %c0_19], %76 {strides = array<i32>} : memref<136x128xf32, #tpu.memory_space<vmem>>, vector<4x128xf32>,
    %c1_i32_20 = arith.constant 1 : i32
    %78 = tpu.dynamic_rotate %57 by %c1_i32_20 dim 1 : vector<4x128xf32>, i32 -> vector<4x128xf32>
    %cst_21 = arith.constant 0.000000e+00 : f32
    %79 = vector.shape_cast %24 : vector<1x128xi1> to vector<1x128xi1>
    %80 = vector.broadcast %79 : vector<1x128xi1> to vector<4x128xi1>
    %81 = vector.broadcast %cst_21 : f32 to vector<4x128xf32>
    %82 = arith.select %80, %78, %81 : vector<4x128xi1>, vector<4x128xf32>
    %c12 = arith.constant 12 : index
    %c0_22 = arith.constant 0 : index
    %83 = vector.load %arg4[%c12, %c0_22] : memref<136x128xf32, #tpu.memory_space<vmem>>, vector<4x128xf32>
    tpu.vector_store %arg4[%c12, %c0_22], %82 {strides = array<i32>} : memref<136x128xf32, #tpu.memory_space<vmem>>, vector<4x128xf32>,
    %c16 = arith.constant 16 : index
    %c0_23 = arith.constant 0 : index
    %84 = vector.load %arg4[%c16, %c0_23] : memref<136x128xf32, #tpu.memory_space<vmem>>, vector<4x128xf32>
    tpu.vector_store %arg4[%c16, %c0_23], %57 {strides = array<i32>} : memref<136x128xf32, #tpu.memory_space<vmem>>, vector<4x128xf32>,
    %c127_i32_24 = arith.constant 127 : i32
    %85 = tpu.dynamic_rotate %57 by %c127_i32_24 dim 1 : vector<4x128xf32>, i32 -> vector<4x128xf32>
    %cst_25 = arith.constant 0.000000e+00 : f32
    %86 = vector.shape_cast %26 : vector<1x128xi1> to vector<1x128xi1>
    %87 = vector.broadcast %86 : vector<1x128xi1> to vector<4x128xi1>
    %88 = vector.broadcast %cst_25 : f32 to vector<4x128xf32>
    %89 = arith.select %87, %85, %88 : vector<4x128xi1>, vector<4x128xf32>
    %c20 = arith.constant 20 : index
    %c0_26 = arith.constant 0 : index
    %90 = vector.load %arg4[%c20, %c0_26] : memref<136x128xf32, #tpu.memory_space<vmem>>, vector<4x128xf32>
    tpu.vector_store %arg4[%c20, %c0_26], %89 {strides = array<i32>} : memref<136x128xf32, #tpu.memory_space<vmem>>, vector<4x128xf32>,
    %c121_i32 = arith.constant 121 : i32
    %91 = tpu.dynamic_rotate %57 by %c121_i32 dim 1 : vector<4x128xf32>, i32 -> vector<4x128xf32>
    %92 = arith.andi %14, %24 : vector<1x128xi1>
    %cst_27 = arith.constant 0.000000e+00 : f32
    %93 = vector.shape_cast %92 : vector<1x128xi1> to vector<1x128xi1>
    %94 = vector.broadcast %93 : vector<1x128xi1> to vector<4x128xi1>
    %95 = vector.broadcast %cst_27 : f32 to vector<4x128xf32>
    %96 = arith.select %94, %91, %95 : vector<4x128xi1>, vector<4x128xf32>
    %c24 = arith.constant 24 : index
    %c0_28 = arith.constant 0 : index
    %97 = vector.load %arg4[%c24, %c0_28] : memref<136x128xf32, #tpu.memory_space<vmem>>, vector<4x128xf32>
    tpu.vector_store %arg4[%c24, %c0_28], %96 {strides = array<i32>} : memref<136x128xf32, #tpu.memory_space<vmem>>, vector<4x128xf32>,
    %c120_i32_29 = arith.constant 120 : i32
    %98 = tpu.dynamic_rotate %57 by %c120_i32_29 dim 1 : vector<4x128xf32>, i32 -> vector<4x128xf32>
    %cst_30 = arith.constant 0.000000e+00 : f32
    %99 = vector.shape_cast %14 : vector<1x128xi1> to vector<1x128xi1>
    %100 = vector.broadcast %99 : vector<1x128xi1> to vector<4x128xi1>
    %101 = vector.broadcast %cst_30 : f32 to vector<4x128xf32>
    %102 = arith.select %100, %98, %101 : vector<4x128xi1>, vector<4x128xf32>
    %c28 = arith.constant 28 : index
    %c0_31 = arith.constant 0 : index
    %103 = vector.load %arg4[%c28, %c0_31] : memref<136x128xf32, #tpu.memory_space<vmem>>, vector<4x128xf32>
    tpu.vector_store %arg4[%c28, %c0_31], %102 {strides = array<i32>} : memref<136x128xf32, #tpu.memory_space<vmem>>, vector<4x128xf32>,
    %c119_i32_32 = arith.constant 119 : i32
    %104 = tpu.dynamic_rotate %57 by %c119_i32_32 dim 1 : vector<4x128xf32>, i32 -> vector<4x128xf32>
    %cst_33 = arith.constant 0.000000e+00 : f32
    %105 = vector.shape_cast %51 : vector<1x128xi1> to vector<1x128xi1>
    %106 = vector.broadcast %105 : vector<1x128xi1> to vector<4x128xi1>
    %107 = vector.broadcast %cst_33 : f32 to vector<4x128xf32>
    %108 = arith.select %106, %104, %107 : vector<4x128xi1>, vector<4x128xf32>
    %c32 = arith.constant 32 : index
    %c0_34 = arith.constant 0 : index
    %109 = vector.load %arg4[%c32, %c0_34] : memref<136x128xf32, #tpu.memory_space<vmem>>, vector<4x128xf32>
    tpu.vector_store %arg4[%c32, %c0_34], %108 {strides = array<i32>} : memref<136x128xf32, #tpu.memory_space<vmem>>, vector<4x128xf32>,
    %cst_35 = arith.constant dense<0.000000e+00> : vector<128xf32>
    %110 = vector.multi_reduction <add>, %57, %cst_35 [0] : vector<4x128xf32> to vector<128xf32>
    %111 = vector.shape_cast %110 : vector<128xf32> to vector<1x128xf32>
    %cst_36 = arith.constant 4.000000e+00 : f32
    %112 = vector.broadcast %cst_36 : f32 to vector<1x128xf32>
    %113 = arith.divf %111, %112 : vector<1x128xf32>
    %cst_37 = arith.constant dense<0xFF800000> : vector<128xf32>
    %114 = vector.multi_reduction <maximumf>, %57, %cst_37 [0] : vector<4x128xf32> to vector<128xf32>
    %115 = vector.shape_cast %114 : vector<128xf32> to vector<1x128xf32>
    %116 = tpu.concatenate %113, %115 in 0 : vector<1x128xf32>, vector<1x128xf32> -> vector<2x128xf32>
    %c27_i32 = arith.constant 27 : i32
    %117 = tpu.dynamic_rotate %116 by %c27_i32 dim 1 : vector<2x128xf32>, i32 -> vector<2x128xf32>
    %118 = arith.andi %8, %20 : vector<1x128xi1>
    %cst_38 = arith.constant 0.000000e+00 : f32
    %119 = vector.shape_cast %118 : vector<1x128xi1> to vector<1x128xi1>
    %120 = vector.broadcast %119 : vector<1x128xi1> to vector<2x128xi1>
    %121 = vector.broadcast %cst_38 : f32 to vector<2x128xf32>
    %122 = arith.select %120, %117, %121 : vector<2x128xi1>, vector<2x128xf32>
    %c36 = arith.constant 36 : index
    %c0_39 = arith.constant 0 : index
    %123 = vector.load %arg4[%c36, %c0_39] : memref<136x128xf32, #tpu.memory_space<vmem>>, vector<2x128xf32>
    tpu.vector_store %arg4[%c36, %c0_39], %122 {strides = array<i32>} : memref<136x128xf32, #tpu.memory_space<vmem>>, vector<2x128xf32>,
    %c26_i32 = arith.constant 26 : i32
    %124 = tpu.dynamic_rotate %116 by %c26_i32 dim 1 : vector<2x128xf32>, i32 -> vector<2x128xf32>
    %125 = arith.andi %8, %22 : vector<1x128xi1>
    %cst_40 = arith.constant 0.000000e+00 : f32
    %126 = vector.shape_cast %125 : vector<1x128xi1> to vector<1x128xi1>
    %127 = vector.broadcast %126 : vector<1x128xi1> to vector<2x128xi1>
    %128 = vector.broadcast %cst_40 : f32 to vector<2x128xf32>
    %129 = arith.select %127, %124, %128 : vector<2x128xi1>, vector<2x128xf32>
    %c38 = arith.constant 38 : index
    %c0_41 = arith.constant 0 : index
    %130 = vector.load %arg4[%c38, %c0_41] : memref<136x128xf32, #tpu.memory_space<vmem>>, vector<2x128xf32>
    tpu.vector_store %arg4[%c38, %c0_41], %129 {strides = array<i32>} : memref<136x128xf32, #tpu.memory_space<vmem>>, vector<2x128xf32>,
    %c25_i32 = arith.constant 25 : i32
    %131 = tpu.dynamic_rotate %116 by %c25_i32 dim 1 : vector<2x128xf32>, i32 -> vector<2x128xf32>
    %132 = arith.andi %8, %24 : vector<1x128xi1>
    %cst_42 = arith.constant 0.000000e+00 : f32
    %133 = vector.shape_cast %132 : vector<1x128xi1> to vector<1x128xi1>
    %134 = vector.broadcast %133 : vector<1x128xi1> to vector<2x128xi1>
    %135 = vector.broadcast %cst_42 : f32 to vector<2x128xf32>
    %136 = arith.select %134, %131, %135 : vector<2x128xi1>, vector<2x128xf32>
    %c40 = arith.constant 40 : index
    %c0_43 = arith.constant 0 : index
    %137 = vector.load %arg4[%c40, %c0_43] : memref<136x128xf32, #tpu.memory_space<vmem>>, vector<2x128xf32>
    tpu.vector_store %arg4[%c40, %c0_43], %136 {strides = array<i32>} : memref<136x128xf32, #tpu.memory_space<vmem>>, vector<2x128xf32>,
    %c24_i32 = arith.constant 24 : i32
    %138 = tpu.dynamic_rotate %116 by %c24_i32 dim 1 : vector<2x128xf32>, i32 -> vector<2x128xf32>
    %cst_44 = arith.constant 0.000000e+00 : f32
    %139 = vector.shape_cast %8 : vector<1x128xi1> to vector<1x128xi1>
    %140 = vector.broadcast %139 : vector<1x128xi1> to vector<2x128xi1>
    %141 = vector.broadcast %cst_44 : f32 to vector<2x128xf32>
    %142 = arith.select %140, %138, %141 : vector<2x128xi1>, vector<2x128xf32>
    %c42 = arith.constant 42 : index
    %c0_45 = arith.constant 0 : index
    %143 = vector.load %arg4[%c42, %c0_45] : memref<136x128xf32, #tpu.memory_space<vmem>>, vector<2x128xf32>
    tpu.vector_store %arg4[%c42, %c0_45], %142 {strides = array<i32>} : memref<136x128xf32, #tpu.memory_space<vmem>>, vector<2x128xf32>,
    %c23_i32 = arith.constant 23 : i32
    %144 = tpu.dynamic_rotate %116 by %c23_i32 dim 1 : vector<2x128xf32>, i32 -> vector<2x128xf32>
    %145 = arith.andi %8, %26 : vector<1x128xi1>
    %cst_46 = arith.constant 0.000000e+00 : f32
    %146 = vector.shape_cast %145 : vector<1x128xi1> to vector<1x128xi1>
    %147 = vector.broadcast %146 : vector<1x128xi1> to vector<2x128xi1>
    %148 = vector.broadcast %cst_46 : f32 to vector<2x128xf32>
    %149 = arith.select %147, %144, %148 : vector<2x128xi1>, vector<2x128xf32>
    %c44 = arith.constant 44 : index
    %c0_47 = arith.constant 0 : index
    %150 = vector.load %arg4[%c44, %c0_47] : memref<136x128xf32, #tpu.memory_space<vmem>>, vector<2x128xf32>
    tpu.vector_store %arg4[%c44, %c0_47], %149 {strides = array<i32>} : memref<136x128xf32, #tpu.memory_space<vmem>>, vector<2x128xf32>,
    %c22_i32 = arith.constant 22 : i32
    %151 = tpu.dynamic_rotate %116 by %c22_i32 dim 1 : vector<2x128xf32>, i32 -> vector<2x128xf32>
    %152 = arith.andi %8, %28 : vector<1x128xi1>
    %cst_48 = arith.constant 0.000000e+00 : f32
    %153 = vector.shape_cast %152 : vector<1x128xi1> to vector<1x128xi1>
    %154 = vector.broadcast %153 : vector<1x128xi1> to vector<2x128xi1>
    %155 = vector.broadcast %cst_48 : f32 to vector<2x128xf32>
    %156 = arith.select %154, %151, %155 : vector<2x128xi1>, vector<2x128xf32>
    %c46 = arith.constant 46 : index
    %c0_49 = arith.constant 0 : index
    %157 = vector.load %arg4[%c46, %c0_49] : memref<136x128xf32, #tpu.memory_space<vmem>>, vector<2x128xf32>
    tpu.vector_store %arg4[%c46, %c0_49], %156 {strides = array<i32>} : memref<136x128xf32, #tpu.memory_space<vmem>>, vector<2x128xf32>,
    %c21_i32 = arith.constant 21 : i32
    %158 = tpu.dynamic_rotate %116 by %c21_i32 dim 1 : vector<2x128xf32>, i32 -> vector<2x128xf32>
    %159 = arith.andi %8, %30 : vector<1x128xi1>
    %cst_50 = arith.constant 0.000000e+00 : f32
    %160 = vector.shape_cast %159 : vector<1x128xi1> to vector<1x128xi1>
    %161 = vector.broadcast %160 : vector<1x128xi1> to vector<2x128xi1>
    %162 = vector.broadcast %cst_50 : f32 to vector<2x128xf32>
    %163 = arith.select %161, %158, %162 : vector<2x128xi1>, vector<2x128xf32>
    %c48 = arith.constant 48 : index
    %c0_51 = arith.constant 0 : index
    %164 = vector.load %arg4[%c48, %c0_51] : memref<136x128xf32, #tpu.memory_space<vmem>>, vector<2x128xf32>
    tpu.vector_store %arg4[%c48, %c0_51], %163 {strides = array<i32>} : memref<136x128xf32, #tpu.memory_space<vmem>>, vector<2x128xf32>,
    %c19_i32 = arith.constant 19 : i32
    %165 = tpu.dynamic_rotate %116 by %c19_i32 dim 1 : vector<2x128xf32>, i32 -> vector<2x128xf32>
    %166 = arith.andi %10, %20 : vector<1x128xi1>
    %cst_52 = arith.constant 0.000000e+00 : f32
    %167 = vector.shape_cast %166 : vector<1x128xi1> to vector<1x128xi1>
    %168 = vector.broadcast %167 : vector<1x128xi1> to vector<2x128xi1>
    %169 = vector.broadcast %cst_52 : f32 to vector<2x128xf32>
    %170 = arith.select %168, %165, %169 : vector<2x128xi1>, vector<2x128xf32>
    %c50 = arith.constant 50 : index
    %c0_53 = arith.constant 0 : index
    %171 = vector.load %arg4[%c50, %c0_53] : memref<136x128xf32, #tpu.memory_space<vmem>>, vector<2x128xf32>
    tpu.vector_store %arg4[%c50, %c0_53], %170 {strides = array<i32>} : memref<136x128xf32, #tpu.memory_space<vmem>>, vector<2x128xf32>,
    %c18_i32 = arith.constant 18 : i32
    %172 = tpu.dynamic_rotate %116 by %c18_i32 dim 1 : vector<2x128xf32>, i32 -> vector<2x128xf32>
    %173 = arith.andi %10, %22 : vector<1x128xi1>
    %cst_54 = arith.constant 0.000000e+00 : f32
    %174 = vector.shape_cast %173 : vector<1x128xi1> to vector<1x128xi1>
    %175 = vector.broadcast %174 : vector<1x128xi1> to vector<2x128xi1>
    %176 = vector.broadcast %cst_54 : f32 to vector<2x128xf32>
    %177 = arith.select %175, %172, %176 : vector<2x128xi1>, vector<2x128xf32>
    %c52 = arith.constant 52 : index
    %c0_55 = arith.constant 0 : index
    %178 = vector.load %arg4[%c52, %c0_55] : memref<136x128xf32, #tpu.memory_space<vmem>>, vector<2x128xf32>
    tpu.vector_store %arg4[%c52, %c0_55], %177 {strides = array<i32>} : memref<136x128xf32, #tpu.memory_space<vmem>>, vector<2x128xf32>,
    %c17_i32 = arith.constant 17 : i32
    %179 = tpu.dynamic_rotate %116 by %c17_i32 dim 1 : vector<2x128xf32>, i32 -> vector<2x128xf32>
    %180 = arith.andi %10, %24 : vector<1x128xi1>
    %cst_56 = arith.constant 0.000000e+00 : f32
    %181 = vector.shape_cast %180 : vector<1x128xi1> to vector<1x128xi1>
    %182 = vector.broadcast %181 : vector<1x128xi1> to vector<2x128xi1>
    %183 = vector.broadcast %cst_56 : f32 to vector<2x128xf32>
    %184 = arith.select %182, %179, %183 : vector<2x128xi1>, vector<2x128xf32>
    %c54 = arith.constant 54 : index
    %c0_57 = arith.constant 0 : index
    %185 = vector.load %arg4[%c54, %c0_57] : memref<136x128xf32, #tpu.memory_space<vmem>>, vector<2x128xf32>
    tpu.vector_store %arg4[%c54, %c0_57], %184 {strides = array<i32>} : memref<136x128xf32, #tpu.memory_space<vmem>>, vector<2x128xf32>,
    %c16_i32 = arith.constant 16 : i32
    %186 = tpu.dynamic_rotate %116 by %c16_i32 dim 1 : vector<2x128xf32>, i32 -> vector<2x128xf32>
    %cst_58 = arith.constant 0.000000e+00 : f32
    %187 = vector.shape_cast %10 : vector<1x128xi1> to vector<1x128xi1>
    %188 = vector.broadcast %187 : vector<1x128xi1> to vector<2x128xi1>
    %189 = vector.broadcast %cst_58 : f32 to vector<2x128xf32>
    %190 = arith.select %188, %186, %189 : vector<2x128xi1>, vector<2x128xf32>
    %c56 = arith.constant 56 : index
    %c0_59 = arith.constant 0 : index
    %191 = vector.load %arg4[%c56, %c0_59] : memref<136x128xf32, #tpu.memory_space<vmem>>, vector<2x128xf32>
    tpu.vector_store %arg4[%c56, %c0_59], %190 {strides = array<i32>} : memref<136x128xf32, #tpu.memory_space<vmem>>, vector<2x128xf32>,
    %c15_i32 = arith.constant 15 : i32
    %192 = tpu.dynamic_rotate %116 by %c15_i32 dim 1 : vector<2x128xf32>, i32 -> vector<2x128xf32>
    %193 = arith.andi %10, %26 : vector<1x128xi1>
    %cst_60 = arith.constant 0.000000e+00 : f32
    %194 = vector.shape_cast %193 : vector<1x128xi1> to vector<1x128xi1>
    %195 = vector.broadcast %194 : vector<1x128xi1> to vector<2x128xi1>
    %196 = vector.broadcast %cst_60 : f32 to vector<2x128xf32>
    %197 = arith.select %195, %192, %196 : vector<2x128xi1>, vector<2x128xf32>
    %c58 = arith.constant 58 : index
    %c0_61 = arith.constant 0 : index
    %198 = vector.load %arg4[%c58, %c0_61] : memref<136x128xf32, #tpu.memory_space<vmem>>, vector<2x128xf32>
    tpu.vector_store %arg4[%c58, %c0_61], %197 {strides = array<i32>} : memref<136x128xf32, #tpu.memory_space<vmem>>, vector<2x128xf32>,
    %c14_i32 = arith.constant 14 : i32
    %199 = tpu.dynamic_rotate %116 by %c14_i32 dim 1 : vector<2x128xf32>, i32 -> vector<2x128xf32>
    %200 = arith.andi %10, %28 : vector<1x128xi1>
    %cst_62 = arith.constant 0.000000e+00 : f32
    %201 = vector.shape_cast %200 : vector<1x128xi1> to vector<1x128xi1>
    %202 = vector.broadcast %201 : vector<1x128xi1> to vector<2x128xi1>
    %203 = vector.broadcast %cst_62 : f32 to vector<2x128xf32>
    %204 = arith.select %202, %199, %203 : vector<2x128xi1>, vector<2x128xf32>
    %c60 = arith.constant 60 : index
    %c0_63 = arith.constant 0 : index
    %205 = vector.load %arg4[%c60, %c0_63] : memref<136x128xf32, #tpu.memory_space<vmem>>, vector<2x128xf32>
    tpu.vector_store %arg4[%c60, %c0_63], %204 {strides = array<i32>} : memref<136x128xf32, #tpu.memory_space<vmem>>, vector<2x128xf32>,
    %c13_i32 = arith.constant 13 : i32
    %206 = tpu.dynamic_rotate %116 by %c13_i32 dim 1 : vector<2x128xf32>, i32 -> vector<2x128xf32>
    %207 = arith.andi %10, %30 : vector<1x128xi1>
    %cst_64 = arith.constant 0.000000e+00 : f32
    %208 = vector.shape_cast %207 : vector<1x128xi1> to vector<1x128xi1>
    %209 = vector.broadcast %208 : vector<1x128xi1> to vector<2x128xi1>
    %210 = vector.broadcast %cst_64 : f32 to vector<2x128xf32>
    %211 = arith.select %209, %206, %210 : vector<2x128xi1>, vector<2x128xf32>
    %c62 = arith.constant 62 : index
    %c0_65 = arith.constant 0 : index
    %212 = vector.load %arg4[%c62, %c0_65] : memref<136x128xf32, #tpu.memory_space<vmem>>, vector<2x128xf32>
    tpu.vector_store %arg4[%c62, %c0_65], %211 {strides = array<i32>} : memref<136x128xf32, #tpu.memory_space<vmem>>, vector<2x128xf32>,
    %c11_i32 = arith.constant 11 : i32
    %213 = tpu.dynamic_rotate %116 by %c11_i32 dim 1 : vector<2x128xf32>, i32 -> vector<2x128xf32>
    %214 = arith.andi %12, %20 : vector<1x128xi1>
    %cst_66 = arith.constant 0.000000e+00 : f32
    %215 = vector.shape_cast %214 : vector<1x128xi1> to vector<1x128xi1>
    %216 = vector.broadcast %215 : vector<1x128xi1> to vector<2x128xi1>
    %217 = vector.broadcast %cst_66 : f32 to vector<2x128xf32>
    %218 = arith.select %216, %213, %217 : vector<2x128xi1>, vector<2x128xf32>
    %c64 = arith.constant 64 : index
    %c0_67 = arith.constant 0 : index
    %219 = vector.load %arg4[%c64, %c0_67] : memref<136x128xf32, #tpu.memory_space<vmem>>, vector<2x128xf32>
    tpu.vector_store %arg4[%c64, %c0_67], %218 {strides = array<i32>} : memref<136x128xf32, #tpu.memory_space<vmem>>, vector<2x128xf32>,
    %c10_i32 = arith.constant 10 : i32
    %220 = tpu.dynamic_rotate %116 by %c10_i32 dim 1 : vector<2x128xf32>, i32 -> vector<2x128xf32>
    %221 = arith.andi %12, %22 : vector<1x128xi1>
    %cst_68 = arith.constant 0.000000e+00 : f32
    %222 = vector.shape_cast %221 : vector<1x128xi1> to vector<1x128xi1>
    %223 = vector.broadcast %222 : vector<1x128xi1> to vector<2x128xi1>
    %224 = vector.broadcast %cst_68 : f32 to vector<2x128xf32>
    %225 = arith.select %223, %220, %224 : vector<2x128xi1>, vector<2x128xf32>
    %c66 = arith.constant 66 : index
    %c0_69 = arith.constant 0 : index
    %226 = vector.load %arg4[%c66, %c0_69] : memref<136x128xf32, #tpu.memory_space<vmem>>, vector<2x128xf32>
    tpu.vector_store %arg4[%c66, %c0_69], %225 {strides = array<i32>} : memref<136x128xf32, #tpu.memory_space<vmem>>, vector<2x128xf32>,
    %c9_i32_70 = arith.constant 9 : i32
    %227 = tpu.dynamic_rotate %116 by %c9_i32_70 dim 1 : vector<2x128xf32>, i32 -> vector<2x128xf32>
    %cst_71 = arith.constant 0.000000e+00 : f32
    %228 = vector.shape_cast %59 : vector<1x128xi1> to vector<1x128xi1>
    %229 = vector.broadcast %228 : vector<1x128xi1> to vector<2x128xi1>
    %230 = vector.broadcast %cst_71 : f32 to vector<2x128xf32>
    %231 = arith.select %229, %227, %230 : vector<2x128xi1>, vector<2x128xf32>
    %c68 = arith.constant 68 : index
    %c0_72 = arith.constant 0 : index
    %232 = vector.load %arg4[%c68, %c0_72] : memref<136x128xf32, #tpu.memory_space<vmem>>, vector<2x128xf32>
    tpu.vector_store %arg4[%c68, %c0_72], %231 {strides = array<i32>} : memref<136x128xf32, #tpu.memory_space<vmem>>, vector<2x128xf32>,
    %c8_i32_73 = arith.constant 8 : i32
    %233 = tpu.dynamic_rotate %116 by %c8_i32_73 dim 1 : vector<2x128xf32>, i32 -> vector<2x128xf32>
    %cst_74 = arith.constant 0.000000e+00 : f32
    %234 = vector.shape_cast %12 : vector<1x128xi1> to vector<1x128xi1>
    %235 = vector.broadcast %234 : vector<1x128xi1> to vector<2x128xi1>
    %236 = vector.broadcast %cst_74 : f32 to vector<2x128xf32>
    %237 = arith.select %235, %233, %236 : vector<2x128xi1>, vector<2x128xf32>
    %c70 = arith.constant 70 : index
    %c0_75 = arith.constant 0 : index
    %238 = vector.load %arg4[%c70, %c0_75] : memref<136x128xf32, #tpu.memory_space<vmem>>, vector<2x128xf32>
    tpu.vector_store %arg4[%c70, %c0_75], %237 {strides = array<i32>} : memref<136x128xf32, #tpu.memory_space<vmem>>, vector<2x128xf32>,
    %c7_i32_76 = arith.constant 7 : i32
    %239 = tpu.dynamic_rotate %116 by %c7_i32_76 dim 1 : vector<2x128xf32>, i32 -> vector<2x128xf32>
    %cst_77 = arith.constant 0.000000e+00 : f32
    %240 = vector.shape_cast %72 : vector<1x128xi1> to vector<1x128xi1>
    %241 = vector.broadcast %240 : vector<1x128xi1> to vector<2x128xi1>
    %242 = vector.broadcast %cst_77 : f32 to vector<2x128xf32>
    %243 = arith.select %241, %239, %242 : vector<2x128xi1>, vector<2x128xf32>
    %c72 = arith.constant 72 : index
    %c0_78 = arith.constant 0 : index
    %244 = vector.load %arg4[%c72, %c0_78] : memref<136x128xf32, #tpu.memory_space<vmem>>, vector<2x128xf32>
    tpu.vector_store %arg4[%c72, %c0_78], %243 {strides = array<i32>} : memref<136x128xf32, #tpu.memory_space<vmem>>, vector<2x128xf32>,
    %c6_i32_79 = arith.constant 6 : i32
    %245 = tpu.dynamic_rotate %116 by %c6_i32_79 dim 1 : vector<2x128xf32>, i32 -> vector<2x128xf32>
    %246 = arith.andi %12, %28 : vector<1x128xi1>
    %cst_80 = arith.constant 0.000000e+00 : f32
    %247 = vector.shape_cast %246 : vector<1x128xi1> to vector<1x128xi1>
    %248 = vector.broadcast %247 : vector<1x128xi1> to vector<2x128xi1>
    %249 = vector.broadcast %cst_80 : f32 to vector<2x128xf32>
    %250 = arith.select %248, %245, %249 : vector<2x128xi1>, vector<2x128xf32>
    %c74 = arith.constant 74 : index
    %c0_81 = arith.constant 0 : index
    %251 = vector.load %arg4[%c74, %c0_81] : memref<136x128xf32, #tpu.memory_space<vmem>>, vector<2x128xf32>
    tpu.vector_store %arg4[%c74, %c0_81], %250 {strides = array<i32>} : memref<136x128xf32, #tpu.memory_space<vmem>>, vector<2x128xf32>,
    %c5_i32_82 = arith.constant 5 : i32
    %252 = tpu.dynamic_rotate %116 by %c5_i32_82 dim 1 : vector<2x128xf32>, i32 -> vector<2x128xf32>
    %253 = arith.andi %12, %30 : vector<1x128xi1>
    %cst_83 = arith.constant 0.000000e+00 : f32
    %254 = vector.shape_cast %253 : vector<1x128xi1> to vector<1x128xi1>
    %255 = vector.broadcast %254 : vector<1x128xi1> to vector<2x128xi1>
    %256 = vector.broadcast %cst_83 : f32 to vector<2x128xf32>
    %257 = arith.select %255, %252, %256 : vector<2x128xi1>, vector<2x128xf32>
    %c76 = arith.constant 76 : index
    %c0_84 = arith.constant 0 : index
    %258 = vector.load %arg4[%c76, %c0_84] : memref<136x128xf32, #tpu.memory_space<vmem>>, vector<2x128xf32>
    tpu.vector_store %arg4[%c76, %c0_84], %257 {strides = array<i32>} : memref<136x128xf32, #tpu.memory_space<vmem>>, vector<2x128xf32>,
    %c3_i32_85 = arith.constant 3 : i32
    %259 = tpu.dynamic_rotate %116 by %c3_i32_85 dim 1 : vector<2x128xf32>, i32 -> vector<2x128xf32>
    %cst_86 = arith.constant 0.000000e+00 : f32
    %260 = vector.shape_cast %20 : vector<1x128xi1> to vector<1x128xi1>
    %261 = vector.broadcast %260 : vector<1x128xi1> to vector<2x128xi1>
    %262 = vector.broadcast %cst_86 : f32 to vector<2x128xf32>
    %263 = arith.select %261, %259, %262 : vector<2x128xi1>, vector<2x128xf32>
    %c78 = arith.constant 78 : index
    %c0_87 = arith.constant 0 : index
    %264 = vector.load %arg4[%c78, %c0_87] : memref<136x128xf32, #tpu.memory_space<vmem>>, vector<2x128xf32>
    tpu.vector_store %arg4[%c78, %c0_87], %263 {strides = array<i32>} : memref<136x128xf32, #tpu.memory_space<vmem>>, vector<2x128xf32>,
    %c2_i32_88 = arith.constant 2 : i32
    %265 = tpu.dynamic_rotate %116 by %c2_i32_88 dim 1 : vector<2x128xf32>, i32 -> vector<2x128xf32>
    %cst_89 = arith.constant 0.000000e+00 : f32
    %266 = vector.shape_cast %22 : vector<1x128xi1> to vector<1x128xi1>
    %267 = vector.broadcast %266 : vector<1x128xi1> to vector<2x128xi1>
    %268 = vector.broadcast %cst_89 : f32 to vector<2x128xf32>
    %269 = arith.select %267, %265, %268 : vector<2x128xi1>, vector<2x128xf32>
    %c80 = arith.constant 80 : index
    %c0_90 = arith.constant 0 : index
    %270 = vector.load %arg4[%c80, %c0_90] : memref<136x128xf32, #tpu.memory_space<vmem>>, vector<2x128xf32>
    tpu.vector_store %arg4[%c80, %c0_90], %269 {strides = array<i32>} : memref<136x128xf32, #tpu.memory_space<vmem>>, vector<2x128xf32>,
    %c1_i32_91 = arith.constant 1 : i32
    %271 = tpu.dynamic_rotate %116 by %c1_i32_91 dim 1 : vector<2x128xf32>, i32 -> vector<2x128xf32>
    %cst_92 = arith.constant 0.000000e+00 : f32
    %272 = vector.shape_cast %24 : vector<1x128xi1> to vector<1x128xi1>
    %273 = vector.broadcast %272 : vector<1x128xi1> to vector<2x128xi1>
    %274 = vector.broadcast %cst_92 : f32 to vector<2x128xf32>
    %275 = arith.select %273, %271, %274 : vector<2x128xi1>, vector<2x128xf32>
    %c82 = arith.constant 82 : index
    %c0_93 = arith.constant 0 : index
    %276 = vector.load %arg4[%c82, %c0_93] : memref<136x128xf32, #tpu.memory_space<vmem>>, vector<2x128xf32>
    tpu.vector_store %arg4[%c82, %c0_93], %275 {strides = array<i32>} : memref<136x128xf32, #tpu.memory_space<vmem>>, vector<2x128xf32>,
    %c84 = arith.constant 84 : index
    %c0_94 = arith.constant 0 : index
    %277 = vector.load %arg4[%c84, %c0_94] : memref<136x128xf32, #tpu.memory_space<vmem>>, vector<2x128xf32>
    tpu.vector_store %arg4[%c84, %c0_94], %116 {strides = array<i32>} : memref<136x128xf32, #tpu.memory_space<vmem>>, vector<2x128xf32>,
    %c127_i32_95 = arith.constant 127 : i32
    %278 = tpu.dynamic_rotate %116 by %c127_i32_95 dim 1 : vector<2x128xf32>, i32 -> vector<2x128xf32>
    %cst_96 = arith.constant 0.000000e+00 : f32
    %279 = vector.shape_cast %26 : vector<1x128xi1> to vector<1x128xi1>
    %280 = vector.broadcast %279 : vector<1x128xi1> to vector<2x128xi1>
    %281 = vector.broadcast %cst_96 : f32 to vector<2x128xf32>
    %282 = arith.select %280, %278, %281 : vector<2x128xi1>, vector<2x128xf32>
    %c86 = arith.constant 86 : index
    %c0_97 = arith.constant 0 : index
    %283 = vector.load %arg4[%c86, %c0_97] : memref<136x128xf32, #tpu.memory_space<vmem>>, vector<2x128xf32>
    tpu.vector_store %arg4[%c86, %c0_97], %282 {strides = array<i32>} : memref<136x128xf32, #tpu.memory_space<vmem>>, vector<2x128xf32>,
    %c126_i32 = arith.constant 126 : i32
    %284 = tpu.dynamic_rotate %116 by %c126_i32 dim 1 : vector<2x128xf32>, i32 -> vector<2x128xf32>
    %cst_98 = arith.constant 0.000000e+00 : f32
    %285 = vector.shape_cast %28 : vector<1x128xi1> to vector<1x128xi1>
    %286 = vector.broadcast %285 : vector<1x128xi1> to vector<2x128xi1>
    %287 = vector.broadcast %cst_98 : f32 to vector<2x128xf32>
    %288 = arith.select %286, %284, %287 : vector<2x128xi1>, vector<2x128xf32>
    %c88 = arith.constant 88 : index
    %c0_99 = arith.constant 0 : index
    %289 = vector.load %arg4[%c88, %c0_99] : memref<136x128xf32, #tpu.memory_space<vmem>>, vector<2x128xf32>
    tpu.vector_store %arg4[%c88, %c0_99], %288 {strides = array<i32>} : memref<136x128xf32, #tpu.memory_space<vmem>>, vector<2x128xf32>,
    %c125_i32 = arith.constant 125 : i32
    %290 = tpu.dynamic_rotate %116 by %c125_i32 dim 1 : vector<2x128xf32>, i32 -> vector<2x128xf32>
    %cst_100 = arith.constant 0.000000e+00 : f32
    %291 = vector.shape_cast %30 : vector<1x128xi1> to vector<1x128xi1>
    %292 = vector.broadcast %291 : vector<1x128xi1> to vector<2x128xi1>
    %293 = vector.broadcast %cst_100 : f32 to vector<2x128xf32>
    %294 = arith.select %292, %290, %293 : vector<2x128xi1>, vector<2x128xf32>
    %c90 = arith.constant 90 : index
    %c0_101 = arith.constant 0 : index
    %295 = vector.load %arg4[%c90, %c0_101] : memref<136x128xf32, #tpu.memory_space<vmem>>, vector<2x128xf32>
    tpu.vector_store %arg4[%c90, %c0_101], %294 {strides = array<i32>} : memref<136x128xf32, #tpu.memory_space<vmem>>, vector<2x128xf32>,
    %c123_i32 = arith.constant 123 : i32
    %296 = tpu.dynamic_rotate %116 by %c123_i32 dim 1 : vector<2x128xf32>, i32 -> vector<2x128xf32>
    %297 = arith.andi %14, %20 : vector<1x128xi1>
    %cst_102 = arith.constant 0.000000e+00 : f32
    %298 = vector.shape_cast %297 : vector<1x128xi1> to vector<1x128xi1>
    %299 = vector.broadcast %298 : vector<1x128xi1> to vector<2x128xi1>
    %300 = vector.broadcast %cst_102 : f32 to vector<2x128xf32>
    %301 = arith.select %299, %296, %300 : vector<2x128xi1>, vector<2x128xf32>
    %c92 = arith.constant 92 : index
    %c0_103 = arith.constant 0 : index
    %302 = vector.load %arg4[%c92, %c0_103] : memref<136x128xf32, #tpu.memory_space<vmem>>, vector<2x128xf32>
    tpu.vector_store %arg4[%c92, %c0_103], %301 {strides = array<i32>} : memref<136x128xf32, #tpu.memory_space<vmem>>, vector<2x128xf32>,
    %c122_i32 = arith.constant 122 : i32
    %303 = tpu.dynamic_rotate %116 by %c122_i32 dim 1 : vector<2x128xf32>, i32 -> vector<2x128xf32>
    %304 = arith.andi %14, %22 : vector<1x128xi1>
    %cst_104 = arith.constant 0.000000e+00 : f32
    %305 = vector.shape_cast %304 : vector<1x128xi1> to vector<1x128xi1>
    %306 = vector.broadcast %305 : vector<1x128xi1> to vector<2x128xi1>
    %307 = vector.broadcast %cst_104 : f32 to vector<2x128xf32>
    %308 = arith.select %306, %303, %307 : vector<2x128xi1>, vector<2x128xf32>
    %c94 = arith.constant 94 : index
    %c0_105 = arith.constant 0 : index
    %309 = vector.load %arg4[%c94, %c0_105] : memref<136x128xf32, #tpu.memory_space<vmem>>, vector<2x128xf32>
    tpu.vector_store %arg4[%c94, %c0_105], %308 {strides = array<i32>} : memref<136x128xf32, #tpu.memory_space<vmem>>, vector<2x128xf32>,
    %c121_i32_106 = arith.constant 121 : i32
    %310 = tpu.dynamic_rotate %116 by %c121_i32_106 dim 1 : vector<2x128xf32>, i32 -> vector<2x128xf32>
    %cst_107 = arith.constant 0.000000e+00 : f32
    %311 = vector.shape_cast %92 : vector<1x128xi1> to vector<1x128xi1>
    %312 = vector.broadcast %311 : vector<1x128xi1> to vector<2x128xi1>
    %313 = vector.broadcast %cst_107 : f32 to vector<2x128xf32>
    %314 = arith.select %312, %310, %313 : vector<2x128xi1>, vector<2x128xf32>
    %c96 = arith.constant 96 : index
    %c0_108 = arith.constant 0 : index
    %315 = vector.load %arg4[%c96, %c0_108] : memref<136x128xf32, #tpu.memory_space<vmem>>, vector<2x128xf32>
    tpu.vector_store %arg4[%c96, %c0_108], %314 {strides = array<i32>} : memref<136x128xf32, #tpu.memory_space<vmem>>, vector<2x128xf32>,
    %c120_i32_109 = arith.constant 120 : i32
    %316 = tpu.dynamic_rotate %116 by %c120_i32_109 dim 1 : vector<2x128xf32>, i32 -> vector<2x128xf32>
    %cst_110 = arith.constant 0.000000e+00 : f32
    %317 = vector.shape_cast %14 : vector<1x128xi1> to vector<1x128xi1>
    %318 = vector.broadcast %317 : vector<1x128xi1> to vector<2x128xi1>
    %319 = vector.broadcast %cst_110 : f32 to vector<2x128xf32>
    %320 = arith.select %318, %316, %319 : vector<2x128xi1>, vector<2x128xf32>
    %c98 = arith.constant 98 : index
    %c0_111 = arith.constant 0 : index
    %321 = vector.load %arg4[%c98, %c0_111] : memref<136x128xf32, #tpu.memory_space<vmem>>, vector<2x128xf32>
    tpu.vector_store %arg4[%c98, %c0_111], %320 {strides = array<i32>} : memref<136x128xf32, #tpu.memory_space<vmem>>, vector<2x128xf32>,
    %c119_i32_112 = arith.constant 119 : i32
    %322 = tpu.dynamic_rotate %116 by %c119_i32_112 dim 1 : vector<2x128xf32>, i32 -> vector<2x128xf32>
    %cst_113 = arith.constant 0.000000e+00 : f32
    %323 = vector.shape_cast %51 : vector<1x128xi1> to vector<1x128xi1>
    %324 = vector.broadcast %323 : vector<1x128xi1> to vector<2x128xi1>
    %325 = vector.broadcast %cst_113 : f32 to vector<2x128xf32>
    %326 = arith.select %324, %322, %325 : vector<2x128xi1>, vector<2x128xf32>
    %c100 = arith.constant 100 : index
    %c0_114 = arith.constant 0 : index
    %327 = vector.load %arg4[%c100, %c0_114] : memref<136x128xf32, #tpu.memory_space<vmem>>, vector<2x128xf32>
    tpu.vector_store %arg4[%c100, %c0_114], %326 {strides = array<i32>} : memref<136x128xf32, #tpu.memory_space<vmem>>, vector<2x128xf32>,
    %c118_i32 = arith.constant 118 : i32
    %328 = tpu.dynamic_rotate %116 by %c118_i32 dim 1 : vector<2x128xf32>, i32 -> vector<2x128xf32>
    %329 = arith.andi %14, %28 : vector<1x128xi1>
    %cst_115 = arith.constant 0.000000e+00 : f32
    %330 = vector.shape_cast %329 : vector<1x128xi1> to vector<1x128xi1>
    %331 = vector.broadcast %330 : vector<1x128xi1> to vector<2x128xi1>
    %332 = vector.broadcast %cst_115 : f32 to vector<2x128xf32>
    %333 = arith.select %331, %328, %332 : vector<2x128xi1>, vector<2x128xf32>
    %c102 = arith.constant 102 : index
    %c0_116 = arith.constant 0 : index
    %334 = vector.load %arg4[%c102, %c0_116] : memref<136x128xf32, #tpu.memory_space<vmem>>, vector<2x128xf32>
    tpu.vector_store %arg4[%c102, %c0_116], %333 {strides = array<i32>} : memref<136x128xf32, #tpu.memory_space<vmem>>, vector<2x128xf32>,
    %c117_i32 = arith.constant 117 : i32
    %335 = tpu.dynamic_rotate %116 by %c117_i32 dim 1 : vector<2x128xf32>, i32 -> vector<2x128xf32>
    %336 = arith.andi %14, %30 : vector<1x128xi1>
    %cst_117 = arith.constant 0.000000e+00 : f32
    %337 = vector.shape_cast %336 : vector<1x128xi1> to vector<1x128xi1>
    %338 = vector.broadcast %337 : vector<1x128xi1> to vector<2x128xi1>
    %339 = vector.broadcast %cst_117 : f32 to vector<2x128xf32>
    %340 = arith.select %338, %335, %339 : vector<2x128xi1>, vector<2x128xf32>
    %c104 = arith.constant 104 : index
    %c0_118 = arith.constant 0 : index
    %341 = vector.load %arg4[%c104, %c0_118] : memref<136x128xf32, #tpu.memory_space<vmem>>, vector<2x128xf32>
    tpu.vector_store %arg4[%c104, %c0_118], %340 {strides = array<i32>} : memref<136x128xf32, #tpu.memory_space<vmem>>, vector<2x128xf32>,
    %c115_i32 = arith.constant 115 : i32
    %342 = tpu.dynamic_rotate %116 by %c115_i32 dim 1 : vector<2x128xf32>, i32 -> vector<2x128xf32>
    %343 = arith.andi %16, %20 : vector<1x128xi1>
    %cst_119 = arith.constant 0.000000e+00 : f32
    %344 = vector.shape_cast %343 : vector<1x128xi1> to vector<1x128xi1>
    %345 = vector.broadcast %344 : vector<1x128xi1> to vector<2x128xi1>
    %346 = vector.broadcast %cst_119 : f32 to vector<2x128xf32>
    %347 = arith.select %345, %342, %346 : vector<2x128xi1>, vector<2x128xf32>
    %c106 = arith.constant 106 : index
    %c0_120 = arith.constant 0 : index
    %348 = vector.load %arg4[%c106, %c0_120] : memref<136x128xf32, #tpu.memory_space<vmem>>, vector<2x128xf32>
    tpu.vector_store %arg4[%c106, %c0_120], %347 {strides = array<i32>} : memref<136x128xf32, #tpu.memory_space<vmem>>, vector<2x128xf32>,
    %c114_i32 = arith.constant 114 : i32
    %349 = tpu.dynamic_rotate %116 by %c114_i32 dim 1 : vector<2x128xf32>, i32 -> vector<2x128xf32>
    %350 = arith.andi %16, %22 : vector<1x128xi1>
    %cst_121 = arith.constant 0.000000e+00 : f32
    %351 = vector.shape_cast %350 : vector<1x128xi1> to vector<1x128xi1>
    %352 = vector.broadcast %351 : vector<1x128xi1> to vector<2x128xi1>
    %353 = vector.broadcast %cst_121 : f32 to vector<2x128xf32>
    %354 = arith.select %352, %349, %353 : vector<2x128xi1>, vector<2x128xf32>
    %c108 = arith.constant 108 : index
    %c0_122 = arith.constant 0 : index
    %355 = vector.load %arg4[%c108, %c0_122] : memref<136x128xf32, #tpu.memory_space<vmem>>, vector<2x128xf32>
    tpu.vector_store %arg4[%c108, %c0_122], %354 {strides = array<i32>} : memref<136x128xf32, #tpu.memory_space<vmem>>, vector<2x128xf32>,
    %c113_i32 = arith.constant 113 : i32
    %356 = tpu.dynamic_rotate %116 by %c113_i32 dim 1 : vector<2x128xf32>, i32 -> vector<2x128xf32>
    %357 = arith.andi %16, %24 : vector<1x128xi1>
    %cst_123 = arith.constant 0.000000e+00 : f32
    %358 = vector.shape_cast %357 : vector<1x128xi1> to vector<1x128xi1>
    %359 = vector.broadcast %358 : vector<1x128xi1> to vector<2x128xi1>
    %360 = vector.broadcast %cst_123 : f32 to vector<2x128xf32>
    %361 = arith.select %359, %356, %360 : vector<2x128xi1>, vector<2x128xf32>
    %c110 = arith.constant 110 : index
    %c0_124 = arith.constant 0 : index
    %362 = vector.load %arg4[%c110, %c0_124] : memref<136x128xf32, #tpu.memory_space<vmem>>, vector<2x128xf32>
    tpu.vector_store %arg4[%c110, %c0_124], %361 {strides = array<i32>} : memref<136x128xf32, #tpu.memory_space<vmem>>, vector<2x128xf32>,
    %c112_i32 = arith.constant 112 : i32
    %363 = tpu.dynamic_rotate %116 by %c112_i32 dim 1 : vector<2x128xf32>, i32 -> vector<2x128xf32>
    %cst_125 = arith.constant 0.000000e+00 : f32
    %364 = vector.shape_cast %16 : vector<1x128xi1> to vector<1x128xi1>
    %365 = vector.broadcast %364 : vector<1x128xi1> to vector<2x128xi1>
    %366 = vector.broadcast %cst_125 : f32 to vector<2x128xf32>
    %367 = arith.select %365, %363, %366 : vector<2x128xi1>, vector<2x128xf32>
    %c112 = arith.constant 112 : index
    %c0_126 = arith.constant 0 : index
    %368 = vector.load %arg4[%c112, %c0_126] : memref<136x128xf32, #tpu.memory_space<vmem>>, vector<2x128xf32>
    tpu.vector_store %arg4[%c112, %c0_126], %367 {strides = array<i32>} : memref<136x128xf32, #tpu.memory_space<vmem>>, vector<2x128xf32>,
    %c111_i32 = arith.constant 111 : i32
    %369 = tpu.dynamic_rotate %116 by %c111_i32 dim 1 : vector<2x128xf32>, i32 -> vector<2x128xf32>
    %370 = arith.andi %16, %26 : vector<1x128xi1>
    %cst_127 = arith.constant 0.000000e+00 : f32
    %371 = vector.shape_cast %370 : vector<1x128xi1> to vector<1x128xi1>
    %372 = vector.broadcast %371 : vector<1x128xi1> to vector<2x128xi1>
    %373 = vector.broadcast %cst_127 : f32 to vector<2x128xf32>
    %374 = arith.select %372, %369, %373 : vector<2x128xi1>, vector<2x128xf32>
    %c114 = arith.constant 114 : index
    %c0_128 = arith.constant 0 : index
    %375 = vector.load %arg4[%c114, %c0_128] : memref<136x128xf32, #tpu.memory_space<vmem>>, vector<2x128xf32>
    tpu.vector_store %arg4[%c114, %c0_128], %374 {strides = array<i32>} : memref<136x128xf32, #tpu.memory_space<vmem>>, vector<2x128xf32>,
    %c110_i32 = arith.constant 110 : i32
    %376 = tpu.dynamic_rotate %116 by %c110_i32 dim 1 : vector<2x128xf32>, i32 -> vector<2x128xf32>
    %377 = arith.andi %16, %28 : vector<1x128xi1>
    %cst_129 = arith.constant 0.000000e+00 : f32
    %378 = vector.shape_cast %377 : vector<1x128xi1> to vector<1x128xi1>
    %379 = vector.broadcast %378 : vector<1x128xi1> to vector<2x128xi1>
    %380 = vector.broadcast %cst_129 : f32 to vector<2x128xf32>
    %381 = arith.select %379, %376, %380 : vector<2x128xi1>, vector<2x128xf32>
    %c116 = arith.constant 116 : index
    %c0_130 = arith.constant 0 : index
    %382 = vector.load %arg4[%c116, %c0_130] : memref<136x128xf32, #tpu.memory_space<vmem>>, vector<2x128xf32>
    tpu.vector_store %arg4[%c116, %c0_130], %381 {strides = array<i32>} : memref<136x128xf32, #tpu.memory_space<vmem>>, vector<2x128xf32>,
    %c109_i32 = arith.constant 109 : i32
    %383 = tpu.dynamic_rotate %116 by %c109_i32 dim 1 : vector<2x128xf32>, i32 -> vector<2x128xf32>
    %384 = arith.andi %16, %30 : vector<1x128xi1>
    %cst_131 = arith.constant 0.000000e+00 : f32
    %385 = vector.shape_cast %384 : vector<1x128xi1> to vector<1x128xi1>
    %386 = vector.broadcast %385 : vector<1x128xi1> to vector<2x128xi1>
    %387 = vector.broadcast %cst_131 : f32 to vector<2x128xf32>
    %388 = arith.select %386, %383, %387 : vector<2x128xi1>, vector<2x128xf32>
    %c118 = arith.constant 118 : index
    %c0_132 = arith.constant 0 : index
    %389 = vector.load %arg4[%c118, %c0_132] : memref<136x128xf32, #tpu.memory_space<vmem>>, vector<2x128xf32>
    tpu.vector_store %arg4[%c118, %c0_132], %388 {strides = array<i32>} : memref<136x128xf32, #tpu.memory_space<vmem>>, vector<2x128xf32>,
    %c107_i32 = arith.constant 107 : i32
    %390 = tpu.dynamic_rotate %116 by %c107_i32 dim 1 : vector<2x128xf32>, i32 -> vector<2x128xf32>
    %391 = arith.andi %18, %20 : vector<1x128xi1>
    %cst_133 = arith.constant 0.000000e+00 : f32
    %392 = vector.shape_cast %391 : vector<1x128xi1> to vector<1x128xi1>
    %393 = vector.broadcast %392 : vector<1x128xi1> to vector<2x128xi1>
    %394 = vector.broadcast %cst_133 : f32 to vector<2x128xf32>
    %395 = arith.select %393, %390, %394 : vector<2x128xi1>, vector<2x128xf32>
    %c120 = arith.constant 120 : index
    %c0_134 = arith.constant 0 : index
    %396 = vector.load %arg4[%c120, %c0_134] : memref<136x128xf32, #tpu.memory_space<vmem>>, vector<2x128xf32>
    tpu.vector_store %arg4[%c120, %c0_134], %395 {strides = array<i32>} : memref<136x128xf32, #tpu.memory_space<vmem>>, vector<2x128xf32>,
    %c106_i32 = arith.constant 106 : i32
    %397 = tpu.dynamic_rotate %116 by %c106_i32 dim 1 : vector<2x128xf32>, i32 -> vector<2x128xf32>
    %398 = arith.andi %18, %22 : vector<1x128xi1>
    %cst_135 = arith.constant 0.000000e+00 : f32
    %399 = vector.shape_cast %398 : vector<1x128xi1> to vector<1x128xi1>
    %400 = vector.broadcast %399 : vector<1x128xi1> to vector<2x128xi1>
    %401 = vector.broadcast %cst_135 : f32 to vector<2x128xf32>
    %402 = arith.select %400, %397, %401 : vector<2x128xi1>, vector<2x128xf32>
    %c122 = arith.constant 122 : index
    %c0_136 = arith.constant 0 : index
    %403 = vector.load %arg4[%c122, %c0_136] : memref<136x128xf32, #tpu.memory_space<vmem>>, vector<2x128xf32>
    tpu.vector_store %arg4[%c122, %c0_136], %402 {strides = array<i32>} : memref<136x128xf32, #tpu.memory_space<vmem>>, vector<2x128xf32>,
    %c105_i32 = arith.constant 105 : i32
    %404 = tpu.dynamic_rotate %116 by %c105_i32 dim 1 : vector<2x128xf32>, i32 -> vector<2x128xf32>
    %405 = arith.andi %18, %24 : vector<1x128xi1>
    %cst_137 = arith.constant 0.000000e+00 : f32
    %406 = vector.shape_cast %405 : vector<1x128xi1> to vector<1x128xi1>
    %407 = vector.broadcast %406 : vector<1x128xi1> to vector<2x128xi1>
    %408 = vector.broadcast %cst_137 : f32 to vector<2x128xf32>
    %409 = arith.select %407, %404, %408 : vector<2x128xi1>, vector<2x128xf32>
    %c124 = arith.constant 124 : index
    %c0_138 = arith.constant 0 : index
    %410 = vector.load %arg4[%c124, %c0_138] : memref<136x128xf32, #tpu.memory_space<vmem>>, vector<2x128xf32>
    tpu.vector_store %arg4[%c124, %c0_138], %409 {strides = array<i32>} : memref<136x128xf32, #tpu.memory_space<vmem>>, vector<2x128xf32>,
    %c104_i32 = arith.constant 104 : i32
    %411 = tpu.dynamic_rotate %116 by %c104_i32 dim 1 : vector<2x128xf32>, i32 -> vector<2x128xf32>
    %cst_139 = arith.constant 0.000000e+00 : f32
    %412 = vector.shape_cast %18 : vector<1x128xi1> to vector<1x128xi1>
    %413 = vector.broadcast %412 : vector<1x128xi1> to vector<2x128xi1>
    %414 = vector.broadcast %cst_139 : f32 to vector<2x128xf32>
    %415 = arith.select %413, %411, %414 : vector<2x128xi1>, vector<2x128xf32>
    %c126 = arith.constant 126 : index
    %c0_140 = arith.constant 0 : index
    %416 = vector.load %arg4[%c126, %c0_140] : memref<136x128xf32, #tpu.memory_space<vmem>>, vector<2x128xf32>
    tpu.vector_store %arg4[%c126, %c0_140], %415 {strides = array<i32>} : memref<136x128xf32, #tpu.memory_space<vmem>>, vector<2x128xf32>,
    %c103_i32 = arith.constant 103 : i32
    %417 = tpu.dynamic_rotate %116 by %c103_i32 dim 1 : vector<2x128xf32>, i32 -> vector<2x128xf32>
    %418 = arith.andi %18, %26 : vector<1x128xi1>
    %cst_141 = arith.constant 0.000000e+00 : f32
    %419 = vector.shape_cast %418 : vector<1x128xi1> to vector<1x128xi1>
    %420 = vector.broadcast %419 : vector<1x128xi1> to vector<2x128xi1>
    %421 = vector.broadcast %cst_141 : f32 to vector<2x128xf32>
    %422 = arith.select %420, %417, %421 : vector<2x128xi1>, vector<2x128xf32>
    %c128 = arith.constant 128 : index
    %c0_142 = arith.constant 0 : index
    %423 = vector.load %arg4[%c128, %c0_142] : memref<136x128xf32, #tpu.memory_space<vmem>>, vector<2x128xf32>
    tpu.vector_store %arg4[%c128, %c0_142], %422 {strides = array<i32>} : memref<136x128xf32, #tpu.memory_space<vmem>>, vector<2x128xf32>,
    %c102_i32 = arith.constant 102 : i32
    %424 = tpu.dynamic_rotate %116 by %c102_i32 dim 1 : vector<2x128xf32>, i32 -> vector<2x128xf32>
    %425 = arith.andi %18, %28 : vector<1x128xi1>
    %cst_143 = arith.constant 0.000000e+00 : f32
    %426 = vector.shape_cast %425 : vector<1x128xi1> to vector<1x128xi1>
    %427 = vector.broadcast %426 : vector<1x128xi1> to vector<2x128xi1>
    %428 = vector.broadcast %cst_143 : f32 to vector<2x128xf32>
    %429 = arith.select %427, %424, %428 : vector<2x128xi1>, vector<2x128xf32>
    %c130 = arith.constant 130 : index
    %c0_144 = arith.constant 0 : index
    %430 = vector.load %arg4[%c130, %c0_144] : memref<136x128xf32, #tpu.memory_space<vmem>>, vector<2x128xf32>
    tpu.vector_store %arg4[%c130, %c0_144], %429 {strides = array<i32>} : memref<136x128xf32, #tpu.memory_space<vmem>>, vector<2x128xf32>,
    %c101_i32 = arith.constant 101 : i32
    %431 = tpu.dynamic_rotate %116 by %c101_i32 dim 1 : vector<2x128xf32>, i32 -> vector<2x128xf32>
    %432 = arith.andi %18, %30 : vector<1x128xi1>
    %cst_145 = arith.constant 0.000000e+00 : f32
    %433 = vector.shape_cast %432 : vector<1x128xi1> to vector<1x128xi1>
    %434 = vector.broadcast %433 : vector<1x128xi1> to vector<2x128xi1>
    %435 = vector.broadcast %cst_145 : f32 to vector<2x128xf32>
    %436 = arith.select %434, %431, %435 : vector<2x128xi1>, vector<2x128xf32>
    %c132 = arith.constant 132 : index
    %c0_146 = arith.constant 0 : index
    %437 = vector.load %arg4[%c132, %c0_146] : memref<136x128xf32, #tpu.memory_space<vmem>>, vector<2x128xf32>
    tpu.vector_store %arg4[%c132, %c0_146], %436 {strides = array<i32>} : memref<136x128xf32, #tpu.memory_space<vmem>>, vector<2x128xf32>,
    %cst_147 = arith.constant 1.000000e+00 : f32
    %438 = vector.broadcast %cst_147 : f32 to vector<1x128xf32>
    %c134 = arith.constant 134 : index
    %c0_148 = arith.constant 0 : index
    %439 = vector.load %arg4[%c134, %c0_148] : memref<136x128xf32, #tpu.memory_space<vmem>>, vector<1x128xf32>
    tpu.vector_store %arg4[%c134, %c0_148], %438 {strides = array<i32>} : memref<136x128xf32, #tpu.memory_space<vmem>>, vector<1x128xf32>,
    %cst_149 = arith.constant 0.000000e+00 : f32
    %440 = vector.broadcast %cst_149 : f32 to vector<1x128xf32>
    %c135 = arith.constant 135 : index
    %c0_150 = arith.constant 0 : index
    %441 = vector.load %arg4[%c135, %c0_150] : memref<136x128xf32, #tpu.memory_space<vmem>>, vector<1x128xf32>
    tpu.vector_store %arg4[%c135, %c0_150], %440 {strides = array<i32>} : memref<136x128xf32, #tpu.memory_space<vmem>>, vector<1x128xf32>,
    %c0_151 = arith.constant 0 : index
    %c0_152 = arith.constant 0 : index
    %442 = vector.load %arg2[%c0_151, %c0_152] : memref<9x136xf32, #tpu.memory_space<vmem>>, vector<9x136xf32>
    %c0_153 = arith.constant 0 : index
    %c0_154 = arith.constant 0 : index
    %443 = vector.load %arg4[%c0_153, %c0_154] : memref<136x128xf32, #tpu.memory_space<vmem>>, vector<136x128xf32>
    %cst_155 = arith.constant dense<0.000000e+00> : vector<9x128xf32>
    %444 = tpu.matmul %442, %443, %cst_155 {dimension_numbers = #tpu.dot_dimension_numbers<[1], [0], [0], [1], [0, 0, 1, 1], [], []>} : vector<9x136xf32>, vector<136x128xf32>, vector<9x128xf32> -> vector<9x128xf32>
    %445 = vector.extract_strided_slice %444 {offsets = [0, 0], sizes = [8, 128], strides = [1, 1]} : vector<9x128xf32> to vector<8x128xf32>
    %cst_156 = arith.constant 0.000000e+00 : f32
    %446 = vector.broadcast %cst_156 : f32 to vector<8x128xf32>
    %447 = arith.cmpf ogt, %445, %446 : vector<8x128xf32>
    %cst_157 = arith.constant 1.000000e-01 : f32
    %448 = vector.broadcast %cst_157 : f32 to vector<8x128xf32>
    %449 = arith.mulf %448, %445 : vector<8x128xf32>
    %450 = arith.select %447, %445, %449 : vector<8x128xi1>, vector<8x128xf32>
    %451 = vector.extract_strided_slice %444 {offsets = [8, 0], sizes = [1, 128], strides = [1, 1]} : vector<9x128xf32> to vector<1x128xf32>
    %cst_158 = arith.constant 0.000000e+00 : f32
    %452 = vector.broadcast %cst_158 : f32 to vector<1x128xf32>
    %453 = arith.subf %452, %451 : vector<1x128xf32>
    %454 = math.exp %453 : vector<1x128xf32>
    %cst_159 = arith.constant 1.000000e+00 : f32
    %455 = vector.broadcast %cst_159 : f32 to vector<1x128xf32>
    %456 = arith.addf %455, %454 : vector<1x128xf32>
    %457 = tpu.reciprocal %456 : vector<1x128xf32> -> vector<1x128xf32>
    %458 = vector.broadcast %457 : vector<1x128xf32> to vector<8x128xf32>
    %459 = arith.mulf %450, %458 : vector<8x128xf32>
    %c0_160 = arith.constant 0 : index
    %c0_161 = arith.constant 0 : index
    %460 = vector.load %arg3[%c0_160, %c0_161] : memref<8x128xf32, #tpu.memory_space<vmem>>, vector<8x128xf32>
    tpu.vector_store %arg3[%c0_160, %c0_161], %459 {strides = array<i32>} : memref<8x128xf32, #tpu.memory_space<vmem>>, vector<8x128xf32>,
    return
  }
  func.func @transform_0(%arg0: i32) -> (i32, i32) {
    %c0_i32 = arith.constant 0 : i32
    %c0_i32_0 = arith.constant 0 : i32
    return %c0_i32, %arg0 : i32, i32
  }
  func.func @transform_1(%arg0: i32) -> (i32, i32) {
    %c0_i32 = arith.constant 0 : i32
    %c0_i32_0 = arith.constant 0 : i32
    %c0_i32_1 = arith.constant 0 : i32
    return %c0_i32, %c0_i32_0 : i32, i32
  }
  func.func @transform_2(%arg0: i32) -> (i32, i32) {
    %c0_i32 = arith.constant 0 : i32
    %c0_i32_0 = arith.constant 0 : i32
    return %c0_i32, %arg0 : i32, i32
  }
}

</mosaic_0001>

<llo_original>
// kernel: tpu_custom_call.1
$region0: #{tpu_custom_call.1}
  #allocation0 [shape = 'u32[]', space=smem, size = 0x4, offset = 0x4, fixed_abs, tag = 'smem constant byte address 0x4 - core index']
  #allocation1 [shape = 'u32[144,128]{1,0:T(1,128)}', space=vmem, size = 0x12000, scoped, tag = 'internal scratch']
  #allocation2 [shape = 'f32[136,128]{1,0:T(8,128)}', space=vmem, size = 0x11000, scoped, tag = 'scratch operand']
  %s0 = inlined_call_operand.hbm [shape: f32[16,128], index: 0, kind: input, shape index: {}]
  %s1 = inlined_call_operand.hbm [shape: f32[9,136], index: 1, kind: input, shape index: {}]
  %s2 = inlined_call_operand.hbm [shape: f32[8,128], index: 2, kind: output, shape index: {}]
  %s3 = sld [smem:[#allocation0]]
  $region26: #{tpu_custom_call.1} parent=0
    _
  %s5 = ssub.s32 1, %s3
  %s6 = scalar_select 0, %s5, %s3
  $region1: #{tpu_custom_call.1} parent=0
    #allocation3 [shape = 'u8[8192]{0}', space=vmem, size = 0x2000, scoped, tag = 'input window, operand 0, single buffered']
    #allocation4 [shape = 's32[1]{0}', space=sflag, size = 0x4, scoped, tag = 'scoped memory for tpu_custom_call.1']
    #allocation5 [shape = 's32[1]{0}', space=sflag, size = 0x4, scoped, tag = 'scoped memory for tpu_custom_call.1']
    #allocation6 [shape = 'u8[16384]{0}', space=vmem, size = 0x4000, scoped, tag = 'input window, operand 1, single buffered']
    #allocation7 [shape = 's32[1]{0}', space=sflag, size = 0x4, scoped, tag = 'scoped memory for tpu_custom_call.1']
    #allocation8 [shape = 'u8[4096]{0}', space=vmem, size = 0x1000, scoped, tag = 'output window, operand 0, single buffered']
    %7 = vsyncpa [#allocation4], 0
    %8 = vsyncpa [#allocation7], 0
    %9 = vsyncpa [#allocation5], 0
    // Predicated region
    $region2: #{tpu_custom_call.1} parent=1 // pred_check
      _
    $region3: #{tpu_custom_call.1} parent=1 // pred_check_branch
      %11 = sbr.rel (0) target = $region5
    $region4: #{tpu_custom_call.1} parent=1 // pred_region
      %s13 = ssub.s32 256, 256
      %14 = vsyncadd [#allocation4], %s13
      %s15 = sshll.u32 [#allocation3], 4
      %s16 = int_to_ptr.vmem [resolvable:$true] %s15
      %21 = dma.hbm_to_vmem [thread:$0]  %s0, 256, %s16, [#allocation4], 128, 128, 8
    $region5: #{tpu_custom_call.1} parent=1 // pred_fallthru
      _
    // Predicated region
    $region6: #{tpu_custom_call.1} parent=1 // pred_check
      _
    $region7: #{tpu_custom_call.1} parent=1 // pred_check_branch
      %23 = sbr.rel (0) target = $region9
    $region8: #{tpu_custom_call.1} parent=1 // pred_region
      %s25 = ssub.s32 512, 512
      %26 = vsyncadd [#allocation7], %s25
      %s27 = sshll.u32 [#allocation6], 4
      %s28 = int_to_ptr.vmem [resolvable:$true] %s27
      %33 = dma.hbm_to_vmem [thread:$0]  %s1, 512, %s28, [#allocation7], 256, 256, 16
    $region9: #{tpu_custom_call.1} parent=1 // pred_fallthru
      _
    // Predicated region
    $region10: #{tpu_custom_call.1} parent=1 // pred_check
      _
    $region11: #{tpu_custom_call.1} parent=1 // pred_check_branch
      %35 = sbr.rel (0) target = $region13
    $region12: #{tpu_custom_call.1} parent=1 // pred_region
      %36 = dma.done [#allocation4], 256
    $region13: #{tpu_custom_call.1} parent=1 // pred_fallthru
      _
    // Predicated region
    $region14: #{tpu_custom_call.1} parent=1 // pred_check
      _
    $region15: #{tpu_custom_call.1} parent=1 // pred_check_branch
      %38 = sbr.rel (0) target = $region17
    $region16: #{tpu_custom_call.1} parent=1 // pred_region
      %39 = dma.done [#allocation7], 512
    $region17: #{tpu_custom_call.1} parent=1 // pred_fallthru
      _
    %v40 = vlaneseq
    %v41 = vand.u32 %v40, 127
    %v42 = vand.u32 %v41, 7
    %v43 = vshra.s32 %v41, 3
    %v44 = vand.u32 %v43, 7
    %vm45 = vcmp.ge.s32.totalorder %v44, 3
    %vm46 = vcmp.ge.s32.totalorder %v44, 2
    %vm47 = vcmp.ge.s32.totalorder %v44, 1
    %vm48 = vcmp.lt.s32.totalorder %v44, 7
    %vm49 = vcmp.lt.s32.totalorder %v44, 6
    %vm50 = vcmp.lt.s32.totalorder %v44, 5
    %vm51 = vcmp.ge.s32.totalorder %v42, 3
    %vm52 = vcmp.ge.s32.totalorder %v42, 2
    %vm53 = vcmp.ge.s32.totalorder %v42, 1
    %vm54 = vcmp.lt.s32.totalorder %v42, 7
    %vm55 = vcmp.lt.s32.totalorder %v42, 6
    %vm56 = vcmp.lt.s32.totalorder %v42, 5
    %v57 = vld [vmem:[#allocation3] sm:$0xff]
    %v58 = vld [vmem:[#allocation3 + $0x8] sm:$0xff]
    %v60 = vrot.slane %v57, 4
    %v62 = vmax.f32 %v57, %v60
    %v64 = vrot.slane %v58, 4
    %v66 = vmax.f32 %v58, %v64
    %v67 = vmax.f32 %v62, %v66
    %68 = vrot.lane.b32.xlu0 %v67, 127
    %v69 = vpop.permute.xlu0 %68
    %v70 = vsel %vm54, 1, 0
    %vm71 = vcmp.eq.s32.totalorder %v70, 1
    %v72 = vsel %vm71, %v69, 0.0
    %v73 = vmax.f32 %v67, %v72
    %74 = vrot.lane.b32.xlu0 %v67, 120
    %v75 = vpop.permute.xlu0 %74
    %v76 = vsel %vm48, 1, 0
    %vm77 = vcmp.eq.s32.totalorder %v76, 1
    %v78 = vsel %vm77, %v75, 0.0
    %79 = vrot.lane.b32.xlu0 %v67, 119
    %v80 = vpop.permute.xlu0 %79
    %vm81 = vmand %vm48, %vm54
    %v82 = vsel %vm81, 1, 0
    %vm83 = vcmp.eq.s32.totalorder %v82, 1
    %v84 = vsel %vm83, %v80, 0.0
    %v85 = vmax.f32 %v78, %v84
    %v86 = vmax.f32 %v73, %v85
    %87 = vrot.lane.b32.xlu0 %v86, 9
    %v88 = vpop.permute.xlu0 %87
    %vm89 = vmand %vm47, %vm53
    %v90 = vsel %vm89, 1, 0
    %vm91 = vcmp.eq.s32.totalorder %v90, 1
    %v92 = vsel %vm91, %v88, 0.0
    %93 = vst [vmem:[#allocation2] sm:$0xf] %v92
    %94 = vrot.lane.b32.xlu0 %v86, 8
    %v95 = vpop.permute.xlu0 %94
    %v96 = vsel %vm47, 1, 0
    %vm97 = vcmp.eq.s32.totalorder %v96, 1
    %v98 = vsel %vm97, %v95, 0.0
    %99 = vst [vmem:[#allocation2 + $0x4] sm:$0xf] %v98
    %100 = vrot.lane.b32.xlu0 %v86, 7
    %v101 = vpop.permute.xlu0 %100
    %vm102 = vmand %vm47, %vm54
    %v103 = vsel %vm102, 1, 0
    %vm104 = vcmp.eq.s32.totalorder %v103, 1
    %v105 = vsel %vm104, %v101, 0.0
    %106 = vst [vmem:[#allocation2 + $0x8] sm:$0xf] %v105
    %107 = vrot.lane.b32.xlu0 %v86, 1
    %v108 = vpop.permute.xlu0 %107
    %v109 = vsel %vm53, 1, 0
    %vm110 = vcmp.eq.s32.totalorder %v109, 1
    %v111 = vsel %vm110, %v108, 0.0
    %112 = vst [vmem:[#allocation2 + $0xc] sm:$0xf] %v111
    %113 = vst [vmem:[#allocation2 + $0x10] sm:$0xf] %v86
    %114 = vrot.lane.b32.xlu0 %v86, 127
    %v115 = vpop.permute.xlu0 %114
    %v116 = vsel %vm71, %v115, 0.0
    %117 = vst [vmem:[#allocation2 + $0x14] sm:$0xf] %v116
    %118 = vrot.lane.b32.xlu0 %v86, 121
    %v119 = vpop.permute.xlu0 %118
    %vm120 = vmand %vm48, %vm53
    %v121 = vsel %vm120, 1, 0
    %vm122 = vcmp.eq.s32.totalorder %v121, 1
    %v123 = vsel %vm122, %v119, 0.0
    %124 = vst [vmem:[#allocation2 + $0x18] sm:$0xf] %v123
    %125 = vrot.lane.b32.xlu0 %v86, 120
    %v126 = vpop.permute.xlu0 %125
    %v127 = vsel %vm77, %v126, 0.0
    %128 = vst [vmem:[#allocation2 + $0x1c] sm:$0xf] %v127
    %129 = vrot.lane.b32.xlu0 %v86, 119
    %v130 = vpop.permute.xlu0 %129
    %v131 = vsel %vm83, %v130, 0.0
    %132 = vst [vmem:[#allocation2 + $0x20] sm:$0xf] %v131
    %vm133 = vcmask 1043456
    %v134 = vsel %vm133, %v86, 0.0
    %v135 = vrot.slane %v134, 4
    %v136 = vadd.f32 %v134, %v135
    %v137 = vrot.slane %v136, 2
    %v138 = vadd.f32 %v136, %v137
    %v139 = vrot.slane %v138, 1
    %v140 = vadd.f32 %v138, %v139
    %v141 = vrcp.pop 4.0
    %v142 = vmul.f32 %v140, %v141
    %v143 = vsel %vm133, %v86, -inf
    %v144 = vrot.slane %v143, 4
    %v145 = vmax.f32 %v143, %v144
    %v146 = vrot.slane %v145, 2
    %v147 = vmax.f32 %v145, %v146
    %v148 = vrot.slane %v147, 1
    %v149 = vmax.f32 %v147, %v148
    %vm150 = vcmask 1040384
    %v151 = vsel %vm150, %v142, %v149
    %152 = vrot.lane.b32.xlu0 %v151, 27
    %v153 = vpop.permute.xlu0 %152
    %vm154 = vmand %vm45, %vm51
    %v155 = vsel %vm154, 1, 0
    %vm156 = vcmp.eq.s32.totalorder %v155, 1
    %v157 = vsel %vm156, %v153, 0.0
    %158 = vst [vmem:[#allocation2 + $0x24] sm:$0x3] %v157
    %159 = vrot.lane.b32.xlu0 %v151, 26
    %v160 = vpop.permute.xlu0 %159
    %vm161 = vmand %vm45, %vm52
    %v162 = vsel %vm161, 1, 0
    %vm163 = vcmp.eq.s32.totalorder %v162, 1
    %v164 = vsel %vm163, %v160, 0.0
    %165 = vst [vmem:[#allocation2 + $0x26] sm:$0x3] %v164
    %166 = vrot.lane.b32.xlu0 %v151, 25
    %v167 = vpop.permute.xlu0 %166
    %vm168 = vmand %vm45, %vm53
    %v169 = vsel %vm168, 1, 0
    %vm170 = vcmp.eq.s32.totalorder %v169, 1
    %v171 = vsel %vm170, %v167, 0.0
    %172 = vst [vmem:[#allocation2 + $0x28] sm:$0x3] %v171
    %173 = vrot.lane.b32.xlu0 %v151, 24
    %v174 = vpop.permute.xlu0 %173
    %v175 = vsel %vm45, 1, 0
    %vm176 = vcmp.eq.s32.totalorder %v175, 1
    %v177 = vsel %vm176, %v174, 0.0
    %178 = vst [vmem:[#allocation2 + $0x2a] sm:$0x3] %v177
    %179 = vrot.lane.b32.xlu0 %v151, 23
    %v180 = vpop.permute.xlu0 %179
    %vm181 = vmand %vm45, %vm54
    %v182 = vsel %vm181, 1, 0
    %vm183 = vcmp.eq.s32.totalorder %v182, 1
    %v184 = vsel %vm183, %v180, 0.0
    %185 = vst [vmem:[#allocation2 + $0x2c] sm:$0x3] %v184
    %186 = vrot.lane.b32.xlu0 %v151, 22
    %v187 = vpop.permute.xlu0 %186
    %vm188 = vmand %vm45, %vm55
    %v189 = vsel %vm188, 1, 0
    %vm190 = vcmp.eq.s32.totalorder %v189, 1
    %v191 = vsel %vm190, %v187, 0.0
    %192 = vst [vmem:[#allocation2 + $0x2e] sm:$0x3] %v191
    %193 = vrot.lane.b32.xlu0 %v151, 21
    %v194 = vpop.permute.xlu0 %193
    %vm195 = vmand %vm45, %vm56
    %v196 = vsel %vm195, 1, 0
    %vm197 = vcmp.eq.s32.totalorder %v196, 1
    %v198 = vsel %vm197, %v194, 0.0
    %199 = vst [vmem:[#allocation2 + $0x30] sm:$0x3] %v198
    %200 = vrot.lane.b32.xlu0 %v151, 19
    %v201 = vpop.permute.xlu0 %200
    %vm202 = vmand %vm46, %vm51
    %v203 = vsel %vm202, 1, 0
    %vm204 = vcmp.eq.s32.totalorder %v203, 1
    %v205 = vsel %vm204, %v201, 0.0
    %206 = vst [vmem:[#allocation2 + $0x32] sm:$0x3] %v205
    %207 = vrot.lane.b32.xlu0 %v151, 18
    %v208 = vpop.permute.xlu0 %207
    %vm209 = vmand %vm46, %vm52
    %v210 = vsel %vm209, 1, 0
    %vm211 = vcmp.eq.s32.totalorder %v210, 1
    %v212 = vsel %vm211, %v208, 0.0
    %213 = vst [vmem:[#allocation2 + $0x34] sm:$0x3] %v212
    %214 = vrot.lane.b32.xlu0 %v151, 17
    %v215 = vpop.permute.xlu0 %214
    %vm216 = vmand %vm46, %vm53
    %v217 = vsel %vm216, 1, 0
    %vm218 = vcmp.eq.s32.totalorder %v217, 1
    %v219 = vsel %vm218, %v215, 0.0
    %220 = vst [vmem:[#allocation2 + $0x36] sm:$0x3] %v219
    %221 = vrot.lane.b32.xlu0 %v151, 16
    %v222 = vpop.permute.xlu0 %221
    %v223 = vsel %vm46, 1, 0
    %vm224 = vcmp.eq.s32.totalorder %v223, 1
    %v225 = vsel %vm224, %v222, 0.0
    %226 = vst [vmem:[#allocation2 + $0x38] sm:$0x3] %v225
    %227 = vrot.lane.b32.xlu0 %v151, 15
    %v228 = vpop.permute.xlu0 %227
    %vm229 = vmand %vm46, %vm54
    %v230 = vsel %vm229, 1, 0
    %vm231 = vcmp.eq.s32.totalorder %v230, 1
    %v232 = vsel %vm231, %v228, 0.0
    %233 = vst [vmem:[#allocation2 + $0x3a] sm:$0x3] %v232
    %234 = vrot.lane.b32.xlu0 %v151, 14
    %v235 = vpop.permute.xlu0 %234
    %vm236 = vmand %vm46, %vm55
    %v237 = vsel %vm236, 1, 0
    %vm238 = vcmp.eq.s32.totalorder %v237, 1
    %v239 = vsel %vm238, %v235, 0.0
    %240 = vst [vmem:[#allocation2 + $0x3c] sm:$0x3] %v239
    %241 = vrot.lane.b32.xlu0 %v151, 13
    %v242 = vpop.permute.xlu0 %241
    %vm243 = vmand %vm46, %vm56
    %v244 = vsel %vm243, 1, 0
    %vm245 = vcmp.eq.s32.totalorder %v244, 1
    %v246 = vsel %vm245, %v242, 0.0
    %247 = vst [vmem:[#allocation2 + $0x3e] sm:$0x3] %v246
    %248 = vrot.lane.b32.xlu0 %v151, 11
    %v249 = vpop.permute.xlu0 %248
    %vm250 = vmand %vm47, %vm51
    %v251 = vsel %vm250, 1, 0
    %vm252 = vcmp.eq.s32.totalorder %v251, 1
    %v253 = vsel %vm252, %v249, 0.0
    %254 = vst [vmem:[#allocation2 + $0x40] sm:$0x3] %v253
    %255 = vrot.lane.b32.xlu0 %v151, 10
    %v256 = vpop.permute.xlu0 %255
    %vm257 = vmand %vm47, %vm52
    %v258 = vsel %vm257, 1, 0
    %vm259 = vcmp.eq.s32.totalorder %v258, 1
    %v260 = vsel %vm259, %v256, 0.0
    %261 = vst [vmem:[#allocation2 + $0x42] sm:$0x3] %v260
    %262 = vrot.lane.b32.xlu0 %v151, 9
    %v263 = vpop.permute.xlu0 %262
    %v264 = vsel %vm91, %v263, 0.0
    %265 = vst [vmem:[#allocation2 + $0x44] sm:$0x3] %v264
    %266 = vrot.lane.b32.xlu0 %v151, 8
    %v267 = vpop.permute.xlu0 %266
    %v268 = vsel %vm97, %v267, 0.0
    %269 = vst [vmem:[#allocation2 + $0x46] sm:$0x3] %v268
    %270 = vrot.lane.b32.xlu0 %v151, 7
    %v271 = vpop.permute.xlu0 %270
    %v272 = vsel %vm104, %v271, 0.0
    %273 = vst [vmem:[#allocation2 + $0x48] sm:$0x3] %v272
    %274 = vrot.lane.b32.xlu0 %v151, 6
    %v275 = vpop.permute.xlu0 %274
    %vm276 = vmand %vm47, %vm55
    %v277 = vsel %vm276, 1, 0
    %vm278 = vcmp.eq.s32.totalorder %v277, 1
    %v279 = vsel %vm278, %v275, 0.0
    %280 = vst [vmem:[#allocation2 + $0x4a] sm:$0x3] %v279
    %281 = vrot.lane.b32.xlu0 %v151, 5
    %v282 = vpop.permute.xlu0 %281
    %vm283 = vmand %vm47, %vm56
    %v284 = vsel %vm283, 1, 0
    %vm285 = vcmp.eq.s32.totalorder %v284, 1
    %v286 = vsel %vm285, %v282, 0.0
    %287 = vst [vmem:[#allocation2 + $0x4c] sm:$0x3] %v286
    %288 = vrot.lane.b32.xlu0 %v151, 3
    %v289 = vpop.permute.xlu0 %288
    %v290 = vsel %vm51, 1, 0
    %vm291 = vcmp.eq.s32.totalorder %v290, 1
    %v292 = vsel %vm291, %v289, 0.0
    %293 = vst [vmem:[#allocation2 + $0x4e] sm:$0x3] %v292
    %294 = vrot.lane.b32.xlu0 %v151, 2
    %v295 = vpop.permute.xlu0 %294
    %v296 = vsel %vm52, 1, 0
    %vm297 = vcmp.eq.s32.totalorder %v296, 1
    %v298 = vsel %vm297, %v295, 0.0
    %299 = vst [vmem:[#allocation2 + $0x50] sm:$0x3] %v298
    %300 = vrot.lane.b32.xlu0 %v151, 1
    %v301 = vpop.permute.xlu0 %300
    %v302 = vsel %vm110, %v301, 0.0
    %303 = vst [vmem:[#allocation2 + $0x52] sm:$0x3] %v302
    %304 = vst [vmem:[#allocation2 + $0x54] sm:$0x3] %v151
    %305 = vrot.lane.b32.xlu0 %v151, 127
    %v306 = vpop.permute.xlu0 %305
    %v307 = vsel %vm71, %v306, 0.0
    %308 = vst [vmem:[#allocation2 + $0x56] sm:$0x3] %v307
    %309 = vrot.lane.b32.xlu0 %v151, 126
    %v310 = vpop.permute.xlu0 %309
    %v311 = vsel %vm55, 1, 0
    %vm312 = vcmp.eq.s32.totalorder %v311, 1
    %v313 = vsel %vm312, %v310, 0.0
    %314 = vst [vmem:[#allocation2 + $0x58] sm:$0x3] %v313
    %315 = vrot.lane.b32.xlu0 %v151, 125
    %v316 = vpop.permute.xlu0 %315
    %v317 = vsel %vm56, 1, 0
    %vm318 = vcmp.eq.s32.totalorder %v317, 1
    %v319 = vsel %vm318, %v316, 0.0
    %320 = vst [vmem:[#allocation2 + $0x5a] sm:$0x3] %v319
    %321 = vrot.lane.b32.xlu0 %v151, 123
    %v322 = vpop.permute.xlu0 %321
    %vm323 = vmand %vm48, %vm51
    %v324 = vsel %vm323, 1, 0
    %vm325 = vcmp.eq.s32.totalorder %v324, 1
    %v326 = vsel %vm325, %v322, 0.0
    %327 = vst [vmem:[#allocation2 + $0x5c] sm:$0x3] %v326
    %328 = vrot.lane.b32.xlu0 %v151, 122
    %v329 = vpop.permute.xlu0 %328
    %vm330 = vmand %vm48, %vm52
    %v331 = vsel %vm330, 1, 0
    %vm332 = vcmp.eq.s32.totalorder %v331, 1
    %v333 = vsel %vm332, %v329, 0.0
    %334 = vst [vmem:[#allocation2 + $0x5e] sm:$0x3] %v333
    %335 = vrot.lane.b32.xlu0 %v151, 121
    %v336 = vpop.permute.xlu0 %335
    %v337 = vsel %vm122, %v336, 0.0
    %338 = vst [vmem:[#allocation2 + $0x60] sm:$0x3] %v337
    %339 = vrot.lane.b32.xlu0 %v151, 120
    %v340 = vpop.permute.xlu0 %339
    %v341 = vsel %vm77, %v340, 0.0
    %342 = vst [vmem:[#allocation2 + $0x62] sm:$0x3] %v341
    %343 = vrot.lane.b32.xlu0 %v151, 119
    %v344 = vpop.permute.xlu0 %343
    %v345 = vsel %vm83, %v344, 0.0
    %346 = vst [vmem:[#allocation2 + $0x64] sm:$0x3] %v345
    %347 = vrot.lane.b32.xlu0 %v151, 118
    %v348 = vpop.permute.xlu0 %347
    %vm349 = vmand %vm48, %vm55
    %v350 = vsel %vm349, 1, 0
    %vm351 = vcmp.eq.s32.totalorder %v350, 1
    %v352 = vsel %vm351, %v348, 0.0
    %353 = vst [vmem:[#allocation2 + $0x66] sm:$0x3] %v352
    %354 = vrot.lane.b32.xlu0 %v151, 117
    %v355 = vpop.permute.xlu0 %354
    %vm356 = vmand %vm48, %vm56
    %v357 = vsel %vm356, 1, 0
    %vm358 = vcmp.eq.s32.totalorder %v357, 1
    %v359 = vsel %vm358, %v355, 0.0
    %360 = vst [vmem:[#allocation2 + $0x68] sm:$0x3] %v359
    %361 = vrot.lane.b32.xlu0 %v151, 115
    %v362 = vpop.permute.xlu0 %361
    %vm363 = vmand %vm49, %vm51
    %v364 = vsel %vm363, 1, 0
    %vm365 = vcmp.eq.s32.totalorder %v364, 1
    %v366 = vsel %vm365, %v362, 0.0
    %367 = vst [vmem:[#allocation2 + $0x6a] sm:$0x3] %v366
    %368 = vrot.lane.b32.xlu0 %v151, 114
    %v369 = vpop.permute.xlu0 %368
    %vm370 = vmand %vm49, %vm52
    %v371 = vsel %vm370, 1, 0
    %vm372 = vcmp.eq.s32.totalorder %v371, 1
    %v373 = vsel %vm372, %v369, 0.0
    %374 = vst [vmem:[#allocation2 + $0x6c] sm:$0x3] %v373
    %375 = vrot.lane.b32.xlu0 %v151, 113
    %v376 = vpop.permute.xlu0 %375
    %vm377 = vmand %vm49, %vm53
    %v378 = vsel %vm377, 1, 0
    %vm379 = vcmp.eq.s32.totalorder %v378, 1
    %v380 = vsel %vm379, %v376, 0.0
    %381 = vst [vmem:[#allocation2 + $0x6e] sm:$0x3] %v380
    %382 = vrot.lane.b32.xlu0 %v151, 112
    %v383 = vpop.permute.xlu0 %382
    %v384 = vsel %vm49, 1, 0
    %vm385 = vcmp.eq.s32.totalorder %v384, 1
    %v386 = vsel %vm385, %v383, 0.0
    %387 = vst [vmem:[#allocation2 + $0x70] sm:$0x3] %v386
    %388 = vrot.lane.b32.xlu0 %v151, 111
    %v389 = vpop.permute.xlu0 %388
    %vm390 = vmand %vm49, %vm54
    %v391 = vsel %vm390, 1, 0
    %vm392 = vcmp.eq.s32.totalorder %v391, 1
    %v393 = vsel %vm392, %v389, 0.0
    %394 = vst [vmem:[#allocation2 + $0x72] sm:$0x3] %v393
    %395 = vrot.lane.b32.xlu0 %v151, 110
    %v396 = vpop.permute.xlu0 %395
    %vm397 = vmand %vm49, %vm55
    %v398 = vsel %vm397, 1, 0
    %vm399 = vcmp.eq.s32.totalorder %v398, 1
    %v400 = vsel %vm399, %v396, 0.0
    %401 = vst [vmem:[#allocation2 + $0x74] sm:$0x3] %v400
    %402 = vrot.lane.b32.xlu0 %v151, 109
    %v403 = vpop.permute.xlu0 %402
    %vm404 = vmand %vm49, %vm56
    %v405 = vsel %vm404, 1, 0
    %vm406 = vcmp.eq.s32.totalorder %v405, 1
    %v407 = vsel %vm406, %v403, 0.0
    %408 = vst [vmem:[#allocation2 + $0x76] sm:$0x3] %v407
    %409 = vrot.lane.b32.xlu0 %v151, 107
    %v410 = vpop.permute.xlu0 %409
    %vm411 = vmand %vm50, %vm51
    %v412 = vsel %vm411, 1, 0
    %vm413 = vcmp.eq.s32.totalorder %v412, 1
    %v414 = vsel %vm413, %v410, 0.0
    %415 = vst [vmem:[#allocation2 + $0x78] sm:$0x3] %v414
    %416 = vrot.lane.b32.xlu0 %v151, 106
    %v417 = vpop.permute.xlu0 %416
    %vm418 = vmand %vm50, %vm52
    %v419 = vsel %vm418, 1, 0
    %vm420 = vcmp.eq.s32.totalorder %v419, 1
    %v421 = vsel %vm420, %v417, 0.0
    %422 = vst [vmem:[#allocation2 + $0x7a] sm:$0x3] %v421
    %423 = vrot.lane.b32.xlu0 %v151, 105
    %v424 = vpop.permute.xlu0 %423
    %vm425 = vmand %vm50, %vm53
    %v426 = vsel %vm425, 1, 0
    %vm427 = vcmp.eq.s32.totalorder %v426, 1
    %v428 = vsel %vm427, %v424, 0.0
    %429 = vst [vmem:[#allocation2 + $0x7c] sm:$0x3] %v428
    %430 = vrot.lane.b32.xlu0 %v151, 104
    %v431 = vpop.permute.xlu0 %430
    %v432 = vsel %vm50, 1, 0
    %vm433 = vcmp.eq.s32.totalorder %v432, 1
    %v434 = vsel %vm433, %v431, 0.0
    %435 = vst [vmem:[#allocation2 + $0x7e] sm:$0x3] %v434
    %436 = vrot.lane.b32.xlu0 %v151, 103
    %v437 = vpop.permute.xlu0 %436
    %vm438 = vmand %vm50, %vm54
    %v439 = vsel %vm438, 1, 0
    %vm440 = vcmp.eq.s32.totalorder %v439, 1
    %v441 = vsel %vm440, %v437, 0.0
    %442 = vst [vmem:[#allocation2 + $0x80] sm:$0x3] %v441
    %443 = vrot.lane.b32.xlu0 %v151, 102
    %v444 = vpop.permute.xlu0 %443
    %vm445 = vmand %vm50, %vm55
    %v446 = vsel %vm445, 1, 0
    %vm447 = vcmp.eq.s32.totalorder %v446, 1
    %v448 = vsel %vm447, %v444, 0.0
    %449 = vst [vmem:[#allocation2 + $0x82] sm:$0x3] %v448
    %450 = vrot.lane.b32.xlu0 %v151, 101
    %v451 = vpop.permute.xlu0 %450
    %vm452 = vmand %vm50, %vm56
    %v453 = vsel %vm452, 1, 0
    %vm454 = vcmp.eq.s32.totalorder %v453, 1
    %v455 = vsel %vm454, %v451, 0.0
    %456 = vst [vmem:[#allocation2 + $0x84] sm:$0x3] %v455
    %457 = vst [vmem:[#allocation2 + $0x86] sm:$0x1] 1.0
    %458 = vst [vmem:[#allocation2 + $0x87] sm:$0x1] 0.0
    %v459 = vld [vmem:[#allocation6] sm:$0xff]
    %v460 = vld [vmem:[#allocation6 + $0x8] sm:$0xff]
    %v461 = vld [vmem:[#allocation6 + $0x10] sm:$0x1]
    %v462 = vld [vmem:[#allocation6 + $0x18] sm:$0x1]
    %v463 = vld [vmem:[#allocation2] sm:$0xff]
    %v464 = vld [vmem:[#allocation2 + $0x8] sm:$0xff]
    %v465 = vld [vmem:[#allocation2 + $0x10] sm:$0xff]
    %v466 = vld [vmem:[#allocation2 + $0x18] sm:$0xff]
    %v467 = vld [vmem:[#allocation2 + $0x20] sm:$0xff]
    %v468 = vld [vmem:[#allocation2 + $0x28] sm:$0xff]
    %v469 = vld [vmem:[#allocation2 + $0x30] sm:$0xff]
    %v470 = vld [vmem:[#allocation2 + $0x38] sm:$0xff]
    %v471 = vld [vmem:[#allocation2 + $0x40] sm:$0xff]
    %v472 = vld [vmem:[#allocation2 + $0x48] sm:$0xff]
    %v473 = vld [vmem:[#allocation2 + $0x50] sm:$0xff]
    %v474 = vld [vmem:[#allocation2 + $0x58] sm:$0xff]
    %v475 = vld [vmem:[#allocation2 + $0x60] sm:$0xff]
    %v476 = vld [vmem:[#allocation2 + $0x68] sm:$0xff]
    %v477 = vld [vmem:[#allocation2 + $0x70] sm:$0xff]
    %v478 = vld [vmem:[#allocation2 + $0x78] sm:$0xff]
    %v479 = vld [vmem:[#allocation2 + $0x80] sm:$0xff]
    %vm480 = vcmask 64512
    %v482 = vsel %vm480, %v460, 0
    %v485 = vsel %vm480, %v462, 0
    %487 = vmatprep.subr.mxu0 0.0
    %488 = vmatpush1.msra.mxu0 %v478
    %489 = vmatprep.subr.mxu0 0.0
    %490 = vmatpush1.msra.mxu0 %v477
    %491 = vmatprep.subr.mxu0 0.0
    %492 = vmatpush1.msra.mxu0 %v476
    %493 = vmatprep.subr.mxu0 0.0
    %494 = vmatpush1.msra.mxu0 %v475
    %495 = vmatprep.subr.mxu0 0.0
    %496 = vmatpush1.msra.mxu0 %v474
    %497 = vmatprep.subr.mxu0 0.0
    %498 = vmatpush1.msra.mxu0 %v473
    %499 = vmatprep.subr.mxu0 0.0
    %500 = vmatpush1.msra.mxu0 %v472
    %501 = vmatprep.subr.mxu0 0.0
    %502 = vmatpush1.msra.mxu0 %v471
    %503 = vmatprep.subr.mxu0 0.0
    %504 = vmatpush1.msra.mxu0 %v470
    %505 = vmatprep.subr.mxu0 0.0
    %506 = vmatpush1.msra.mxu0 %v469
    %507 = vmatprep.subr.mxu0 0.0
    %508 = vmatpush1.msra.mxu0 %v468
    %509 = vmatprep.subr.mxu0 0.0
    %510 = vmatpush1.msra.mxu0 %v467
    %511 = vmatprep.subr.mxu0 0.0
    %512 = vmatpush1.msra.mxu0 %v466
    %513 = vmatprep.subr.mxu0 0.0
    %514 = vmatpush1.msra.mxu0 %v465
    %515 = vmatprep.subr.mxu0 0.0
    %516 = vmatpush1.msra.mxu0 %v464
    %517 = vmatprep.subr.mxu0 0.0
    %518 = vmatpush1.msra.mxu0 %v463
    %519 = vmatprep.subr.mxu0 0.0
    %520 = vmatpush2.msra.mxu0 0.0
    %521 = vmatprep.subr.mxu0 0.0
    %522 = vmatpush2.msra.mxu0 0.0
    %523 = vmatprep.subr.mxu0 0.0
    %524 = vmatpush2.msra.mxu0 0.0
    %525 = vmatprep.subr.mxu0 0.0
    %526 = vmatpush2.msra.mxu0 0.0
    %527 = vmatprep.subr.mxu0 0.0
    %528 = vmatpush2.msra.mxu0 0.0
    %529 = vmatprep.subr.mxu0 0.0
    %530 = vmatpush2.msra.mxu0 0.0
    %531 = vmatprep.subr.mxu0 0.0
    %532 = vmatpush2.msra.mxu0 0.0
    %533 = vmatprep.subr.mxu0 0.0
    %534 = vmatpush2.msra.mxu0 0.0
    %535 = vmatprep.subr.mxu0 0.0
    %536 = vmatpush2.msra.mxu0 0.0
    %537 = vmatprep.subr.mxu0 0.0
    %538 = vmatpush2.msra.mxu0 0.0
    %539 = vmatprep.subr.mxu0 0.0
    %540 = vmatpush2.msra.mxu0 0.0
    %541 = vmatprep.subr.mxu0 0.0
    %542 = vmatpush2.msra.mxu0 0.0
    %543 = vmatprep.subr.mxu0 0.0
    %544 = vmatpush2.msra.mxu0 0.0
    %545 = vmatprep.subr.mxu0 0.0
    %546 = vmatpush2.msra.mxu0 0.0
    %547 = vmatprep.subr.mxu0 0.0
    %548 = vmatpush2.msra.mxu0 0.0
    %549 = vmatprep.subr.mxu0 0.0
    %550 = vmatpush2.msra.mxu0 %v479
    %551 = vmatprep.mubr.f32.mxu0 %v482
    %552 = vmatmul.mubr.f32.gmra.mxu0 %v459
    %v553 = vpop.f32.mrf.mxu0
    %v554 = vadd.f32 0.0, %v553
    %v555 = vpop.f32.mrf.mxu0
    %556 = vmatprep.mubr.f32.mxu0 %v485
    %557 = vmatmul.mubr.f32.gmra.mxu0 %v461
    %v558 = vpop.f32.mrf.mxu0
    %v559 = vadd.f32 0.0, %v558
    %v560 = vpop.f32.mrf.mxu0
    %561 = vdwg.mxu0
    %vm562 = vcmp.gt.f32.partialorder %v554, 0.0
    %v563 = vmul.f32 %v554, 0.1
    %v564 = vsel %vm562, %v554, %v563
    %v565 = vsub.f32 0.0, %v559
    %v566 = vmul.f32 %v565, 1.442695
    %v567 = vpow.pop %v566
    %v568 = vadd.f32 %v567, 1.0
    %v569 = vrcp.pop %v568
    %v570 = vlaneseq
    %v571 = vshrl.u32 %v570, 7
    %v572 = vsub.s32 0, %v571
    %v573 = vrot.slane %v569, %v572
    %v574 = vmul.f32 %v564, %v573
    %575 = vst [vmem:[#allocation8] sm:$0xff] %v574
    // Predicated region
    $region18: #{tpu_custom_call.1} parent=1 // pred_check
      _
    $region19: #{tpu_custom_call.1} parent=1 // pred_check_branch
      %577 = sbr.rel (0) target = $region21
    $region20: #{tpu_custom_call.1} parent=1 // pred_region
      %s579 = ssub.s32 128, 128
      %580 = vsyncadd [#allocation5], %s579
      %s582 = sshll.u32 [#allocation8], 4
      %s583 = int_to_ptr.vmem [resolvable:$true] %s582
      %585 = dma.vmem_to_hbm [thread:$0]  %s583, 128, %s2, [#allocation5]
    $region21: #{tpu_custom_call.1} parent=1 // pred_fallthru
      _
    // Predicated region
    $region22: #{tpu_custom_call.1} parent=1 // pred_check
      _
    $region23: #{tpu_custom_call.1} parent=1 // pred_check_branch
      %587 = sbr.rel (0) target = $region25
    $region24: #{tpu_custom_call.1} parent=1 // pred_region
      %588 = dma.done [#allocation5], 128
    $region25: #{tpu_custom_call.1} parent=1 // pred_fallthru
      _
    %589 = vsyncpa [#allocation4], 1
    %590 = vsyncpa [#allocation7], 1
    %591 = vsyncpa [#allocation5], 1

</llo_original>
